<compile_context>
chip_gen: v7x
topology: tpu7x:2x2x1
jax: 0.10.0
libtpu: 0.0.40
codegen_flags: <defaults>
</compile_context>

<pallas_src>
import math

import jax
import jax.numpy as jnp
from jax.experimental import pallas as pl
from jax.experimental.pallas import tpu as pltpu

LN_EPS = 1e-5
_MIB = 1024 * 1024


def _patch_merge_kernel(x_ref, we_ref, wo_ref, bias_ref, o_ref):
    # x_ref:    [tr, 2, w2, 2C]   [:,0] = even spatial rows -> [x0;x2] per token
    #                             [:,1] = odd  spatial rows -> [x1;x3] per token
    # we_ref:   [2C, 2Cout]       gamma-folded weight rows for [x0;x2]
    # wo_ref:   [2C, 2Cout]       gamma-folded weight rows for [x1;x3]
    # bias_ref: [1, 2Cout]        beta @ W   (f32)
    # o_ref:    [tr*w2, 2Cout]    lane-dense 2D output slab (no output reshape)
    tr, _, w2, c2 = x_ref.shape
    t = tr * w2

    # NOTE: when w2 % 8 != 0 (late Swin stages) these flattens are a sublane
    # relayout (one in-VMEM copy per half); that VPU/XLU work overlaps the next
    # tile's DMA in this HBM-bound kernel.  When w2 % 8 == 0 they are free.
    ef = x_ref[:, 0].reshape(t, c2).astype(jnp.float32)
    of = x_ref[:, 1].reshape(t, c2).astype(jnp.float32)

    # One-pass LayerNorm statistics over the full 4C feature (both halves), f32.
    inv_n = 1.0 / (2.0 * c2)
    s = jnp.sum(ef, axis=-1, keepdims=True) + jnp.sum(of, axis=-1, keepdims=True)
    ss = (jnp.sum(ef * ef, axis=-1, keepdims=True)
          + jnp.sum(of * of, axis=-1, keepdims=True))
    mean = s * inv_n
    var = jnp.maximum(ss * inv_n - mean * mean, 0.0)  # E[x^2]-E[x]^2 may dip < 0
    inv = jax.lax.rsqrt(var + LN_EPS)

    cdt = we_ref.dtype  # MXU operand dtype (bf16 by default); f32 accumulation.
    # Normalize each half and feed the MXU immediately, so the normalized
    # (cast) operand is consumed right away instead of being held for both
    # halves at once -> lower f32/VMEM temporary pressure.
    acc = jnp.dot(((ef - mean) * inv).astype(cdt), we_ref[...],
                  preferred_element_type=jnp.float32)
    acc = acc + jnp.dot(((of - mean) * inv).astype(cdt), wo_ref[...],
                        preferred_element_type=jnp.float32)
    acc = acc + bias_ref[...].astype(jnp.float32)
    o_ref[...] = acc.astype(o_ref.dtype)


def _chip_profile():
    """Return (vmem_limit_bytes, multi_tensorcore_guess) for the local chip."""
    vmem_cap = None
    try:
        vmem_cap = int(pltpu.get_tpu_info().vmem_capacity_bytes)
    except Exception:
        vmem_cap = None
    kind = ""
    try:
        kind = jax.devices()[0].device_kind.lower()
    except Exception:
        kind = ""
    if vmem_cap is None:
        # 128 MiB on v5e/v6e, 64 MiB per TensorCore on v7x; conservative default.
        vmem_cap = 64 * _MIB if ("7" in kind or not kind) else 128 * _MIB
    multi_tc = (vmem_cap <= 64 * _MIB) or ("7" in kind)
    # ~96 MiB usable on 128 MiB chips (v5e/v6e); <=48 MiB on 64 MiB (v7x).
    vmem_limit = min(int(0.75 * vmem_cap), 100 * _MIB)
    return vmem_limit, multi_tc


def _pick_rows_per_step(R, w2, row_hbm, row_vmem, usable_vmem, multi_tc,
                        target_step_bytes):
    """Merged-grid rows per step: big byte-sized tiles, VMEM-safe, TC-balanced."""
    m8 = 8 // math.gcd(w2, 8)  # makes the output block's sublane dim % 8 == 0
    tr = min(R,
             max(1, target_step_bytes // max(row_hbm, 1)),
             max(1, usable_vmem // max(row_vmem, 1)))
    if multi_tc and R >= 2 * m8:
        # v7x: give both TensorCores work (the 'parallel' axis splits the grid).
        tr = min(tr, pl.cdiv(R, 2))
    if tr < R:
        tr = max(m8, (tr // m8) * m8)
        tr = min(tr, R)
    grid = pl.cdiv(R, tr)
    if multi_tc and grid > 1 and grid % 2 == 1:
        # Best effort: even number of steps so both TensorCores get equal work.
        tr2 = max(m8, (pl.cdiv(R, grid + 1) // m8) * m8)
        if pl.cdiv(R, tr2) % 2 == 0:
            tr = tr2
            grid = pl.cdiv(R, tr2)
    return tr, grid


def patch_merging(x, input_resolution, gamma, beta, weight, *,
                  compute_dtype=jnp.bfloat16,
                  target_step_bytes=16 * _MIB,
                  rows_per_step=None):
    """Fused PatchMerging: x:[B, H*W, C] -> [B, (H/2)*(W/2), 2*C].

    `weight` is the reduction matrix in [4C, 2C] (in x out) layout; `gamma` /
    `beta` are the LayerNorm(4C) parameters.  MXU operands use `compute_dtype`
    (bf16 by default, including for f32 activations) with f32 accumulation and
    f32 LayerNorm statistics.  `rows_per_step` is a testing/tuning override.
    """
    H, W = input_resolution
    B, L, C = x.shape
    assert L == H * W, "input feature has wrong size"
    assert H % 2 == 0 and W % 2 == 0, f"x size ({H}*{W}) are not even."

    w2 = W // 2
    c2 = 2 * C            # per-half feature width ([x0;x2] or [x1;x3])
    c2o = 2 * C           # output feature width
    R = B * (H // 2)      # merged-grid rows
    n_tok = R * w2

    cdt = jnp.dtype(compute_dtype) if compute_dtype is not None else jnp.dtype(x.dtype)

    # ---- one-time host-side parameter prep: fold gamma/beta, permute rows ----
    wg = weight.astype(jnp.float32) * gamma.astype(jnp.float32)[:, None]
    w_even = jnp.concatenate([wg[0:C], wg[2 * C:3 * C]], axis=0).astype(cdt)     # rows for [x0;x2]
    w_odd = jnp.concatenate([wg[C:2 * C], wg[3 * C:4 * C]], axis=0).astype(cdt)  # rows for [x1;x3]
    bias = (beta.astype(jnp.float32) @ weight.astype(jnp.float32)).reshape(1, c2o)

    # Free, order-preserving reshape: [:,0] = even spatial rows, [:,1] = odd.
    x4 = x.reshape(R, 2, w2, c2)

    # ---- per-generation tiling: size tiles by HBM bytes under a VMEM budget ----
    in_it = jnp.dtype(x.dtype).itemsize
    out_it = in_it
    cdt_it = jnp.dtype(cdt).itemsize

    row_in = 2 * w2 * c2 * in_it          # one merged row's input strip
    row_out = w2 * c2o * out_it
    row_hbm = row_in + row_out            # HBM traffic per merged row
    # Honest per-row VMEM: double-buffered I/O tiles + in-kernel temporaries
    # (two f32 halves, one cast matmul operand, f32 accumulator, relayout slack).
    row_tmp = w2 * (2 * c2 * 4 + c2 * cdt_it + c2o * 4 + 2 * c2 * in_it)
    row_vmem = 2 * (row_in + row_out) + row_tmp

    w_bytes = 2 * c2 * c2o * cdt_it + c2o * 4
    vmem_limit, multi_tc = _chip_profile()
    # Budget weights double-buffered even though Buffered(1) is requested below.
    usable = max(int(0.8 * vmem_limit) - 2 * w_bytes, row_vmem)

    if rows_per_step is None:
        tr, grid = _pick_rows_per_step(R, w2, row_hbm, row_vmem, usable,
                                       multi_tc, target_step_bytes)
    else:
        m8 = 8 // math.gcd(w2, 8)
        tr = max(1, min(int(rows_per_step), R))
        if tr < R:
            tr = max(m8, (tr // m8) * m8)
        grid = pl.cdiv(R, tr)

    cost = pl.CostEstimate(
        flops=int(2 * n_tok * (4 * C) * c2o + 10 * n_tok * (4 * C)),
        transcendentals=int(n_tok),
        bytes_accessed=int(x.size * in_it + 2 * c2 * c2o * cdt_it
                           + n_tok * c2o * out_it),
    )

    def build(single_buffer_weights):
        wkw = {"pipeline_mode": pl.Buffered(1)} if single_buffer_weights else {}
        in_specs = [
            # One fully contiguous DMA per step (both slabs together).
            pl.BlockSpec((tr, 2, w2, c2), lambda g: (g, 0, 0, 0)),
            pl.BlockSpec((c2, c2o), lambda g: (0, 0), **wkw),
            pl.BlockSpec((c2, c2o), lambda g: (0, 0), **wkw),
            pl.BlockSpec((1, c2o), lambda g: (0, 0), **wkw),
        ]
        return pl.pallas_call(
            _patch_merge_kernel,
            out_shape=jax.ShapeDtypeStruct((n_tok, c2o), x.dtype),
            grid_spec=pltpu.PrefetchScalarGridSpec(
                num_scalar_prefetch=0,
                grid=(grid,),
                in_specs=in_specs,
                # Lane-dense 2D store; sublane dim (tr*w2) is a multiple of 8
                # whenever grid > 1; the partial final block is masked.
                out_specs=pl.BlockSpec((tr * w2, c2o), lambda g: (g, 0)),
            ),
            compiler_params=pltpu.CompilerParams(
                dimension_semantics=("parallel",),
                vmem_limit_bytes=int(vmem_limit)),
            cost_estimate=cost,
        )

    try:
        out2d = build(True)(x4, w_even, w_odd, bias)
    except Exception:
        # TODO(synk): pl.Buffered(1) (single-buffered resident weights) not
        # accepted by this JAX build; fall back to default double buffering.
        out2d = build(False)(x4, w_even, w_odd, bias)

    return out2d.reshape(B, (H // 2) * w2, c2o)


def _reference(x, input_resolution, gamma, beta, weight):
    """Pure-JAX f32 reference mirroring the PyTorch forward."""
    H, W = input_resolution
    B, L, C = x.shape
    xg = x.astype(jnp.float32).reshape(B, H, W, C)
    x0 = xg[:, 0::2, 0::2, :]
    x1 = xg[:, 1::2, 0::2, :]
    x2 = xg[:, 0::2, 1::2, :]
    x3 = xg[:, 1::2, 1::2, :]
    xm = jnp.concatenate([x0, x1, x2, x3], axis=-1).reshape(B, -1, 4 * C)
    mean = jnp.mean(xm, axis=-1, keepdims=True)
    var = jnp.mean((xm - mean) ** 2, axis=-1, keepdims=True)
    xn = (xm - mean) * jax.lax.rsqrt(var + LN_EPS) * gamma + beta
    return xn @ weight


if __name__ == "__main__":
    # Small, even spatial resolution consistent with the module.
    B, H, W, C = 2, 16, 16, 32            # x: [B, H*W, C] = [2, 256, 32]
    key = jax.random.PRNGKey(0)
    kx, kw, kg, kb = jax.random.split(key, 4)

    x = jax.random.normal(kx, (B, H * W, C), dtype=jnp.float32)
    # reduction: Linear(4*dim, 2*dim, bias=False) -> weight [4C, 2C] (in x out)
    # norm:      LayerNorm(4*dim)                 -> gamma/beta [4C]
    weight = jax.random.normal(kw, (4 * C, 2 * C), dtype=jnp.float32) * 0.02
    gamma = 1.0 + 0.1 * jax.random.normal(kg, (4 * C,), dtype=jnp.float32)
    beta = 0.1 * jax.random.normal(kb, (4 * C,), dtype=jnp.float32)

    ref = _reference(x, (H, W), gamma, beta, weight)

    # 1) Exact path: f32 activations + f32 MXU operands (tight check).
    out_f32 = jax.block_until_ready(
        patch_merging(x, (H, W), gamma, beta, weight, compute_dtype=jnp.float32))
    assert out_f32.shape == (B, (H // 2) * (W // 2), 2 * C), out_f32.shape
    assert jnp.allclose(out_f32, ref, atol=1e-4, rtol=1e-4), "f32 path mismatch"

    # 2) Multi-step grid with a non-divisible / partial final block
    #    (R=16, 3 rows per step -> 6 steps, last block has 1 valid row).
    out_part = jax.block_until_ready(
        patch_merging(x, (H, W), gamma, beta, weight, compute_dtype=jnp.float32,
                      rows_per_step=3))
    assert jnp.allclose(out_part, ref, atol=1e-4, rtol=1e-4), "partial-block mismatch"

    # 3) Default path: bf16 MXU operands, f32 accumulation (loose check).
    out_def = jax.block_until_ready(patch_merging(x, (H, W), gamma, beta, weight))
    assert out_def.dtype == x.dtype
    assert jnp.allclose(out_def, ref, atol=3e-2, rtol=3e-2), "bf16-operand path mismatch"

    # 4) bf16 activations end-to-end (bf16 HBM I/O, bf16 MXU, f32 accumulation).
    outb = jax.block_until_ready(
        patch_merging(x.astype(jnp.bfloat16), (H, W), gamma, beta, weight))
    assert outb.shape == (B, (H // 2) * (W // 2), 2 * C)
    assert outb.dtype == jnp.bfloat16
    assert bool(jnp.all(jnp.isfinite(outb.astype(jnp.float32))))

    print("KERNEL_OK")
</pallas_src>

<mosaic_0001>
module attributes {stable_mosaic.version = 11 : i64} {
  func.func @_patch_merge_kernel(%arg0: i32, %arg1: memref<16x2x8x64xf32, #tpu.memory_space<vmem>>, %arg2: memref<64x64xf32, #tpu.memory_space<vmem>>, %arg3: memref<64x64xf32, #tpu.memory_space<vmem>>, %arg4: memref<1x64xf32, #tpu.memory_space<vmem>>, %arg5: memref<128x64xf32, #tpu.memory_space<vmem>>) attributes {dimension_semantics = [#tpu.dimension_semantics<parallel>], iteration_bounds = array<i64: 1>, scalar_prefetch = 0 : i64, scratch_operands = 0 : i64, tpu.core_type = #tpu.core_type<tc>, window_params = [{transform_indices = @transform_0, window_bounds = array<i64: 16, 2, 8, 64>}, {pipeline_mode = #tpu.pipeline_mode<synchronous>, transform_indices = @transform_1, window_bounds = array<i64: 64, 64>}, {pipeline_mode = #tpu.pipeline_mode<synchronous>, transform_indices = @transform_2, window_bounds = array<i64: 64, 64>}, {pipeline_mode = #tpu.pipeline_mode<synchronous>, transform_indices = @transform_3, window_bounds = array<i64: 1, 64>}, {transform_indices = @transform_4, window_bounds = array<i64: 128, 64>}]} {
    %c0 = arith.constant 0 : index
    %c0_0 = arith.constant 0 : index
    %c0_1 = arith.constant 0 : index
    %c0_2 = arith.constant 0 : index
    %0 = vector.load %arg1[%c0, %c0_0, %c0_1, %c0_2] : memref<16x2x8x64xf32, #tpu.memory_space<vmem>>, vector<16x1x8x64xf32>
    %1 = vector.shape_cast %0 : vector<16x1x8x64xf32> to vector<16x8x64xf32>
    %2 = vector.shape_cast %1 : vector<16x8x64xf32> to vector<128x64xf32>
    %c0_3 = arith.constant 0 : index
    %c1 = arith.constant 1 : index
    %c0_4 = arith.constant 0 : index
    %c0_5 = arith.constant 0 : index
    %3 = vector.load %arg1[%c0_3, %c1, %c0_4, %c0_5] : memref<16x2x8x64xf32, #tpu.memory_space<vmem>>, vector<16x1x8x64xf32>
    %4 = vector.shape_cast %3 : vector<16x1x8x64xf32> to vector<16x8x64xf32>
    %5 = vector.shape_cast %4 : vector<16x8x64xf32> to vector<128x64xf32>
    %cst = arith.constant dense<0.000000e+00> : vector<128xf32>
    %6 = vector.multi_reduction <add>, %2, %cst [1] : vector<128x64xf32> to vector<128xf32>
    %7 = vector.shape_cast %6 : vector<128xf32> to vector<128x1xf32>
    %cst_6 = arith.constant dense<0.000000e+00> : vector<128xf32>
    %8 = vector.multi_reduction <add>, %5, %cst_6 [1] : vector<128x64xf32> to vector<128xf32>
    %9 = vector.shape_cast %8 : vector<128xf32> to vector<128x1xf32>
    %10 = arith.addf %7, %9 : vector<128x1xf32>
    %11 = arith.mulf %2, %2 : vector<128x64xf32>
    %cst_7 = arith.constant dense<0.000000e+00> : vector<128xf32>
    %12 = vector.multi_reduction <add>, %11, %cst_7 [1] : vector<128x64xf32> to vector<128xf32>
    %13 = vector.shape_cast %12 : vector<128xf32> to vector<128x1xf32>
    %14 = arith.mulf %5, %5 : vector<128x64xf32>
    %cst_8 = arith.constant dense<0.000000e+00> : vector<128xf32>
    %15 = vector.multi_reduction <add>, %14, %cst_8 [1] : vector<128x64xf32> to vector<128xf32>
    %16 = vector.shape_cast %15 : vector<128xf32> to vector<128x1xf32>
    %17 = arith.addf %13, %16 : vector<128x1xf32>
    %cst_9 = arith.constant 7.812500e-03 : f32
    %18 = vector.broadcast %cst_9 : f32 to vector<128x1xf32>
    %19 = arith.mulf %10, %18 : vector<128x1xf32>
    %cst_10 = arith.constant 7.812500e-03 : f32
    %20 = vector.broadcast %cst_10 : f32 to vector<128x1xf32>
    %21 = arith.mulf %17, %20 : vector<128x1xf32>
    %22 = arith.mulf %19, %19 : vector<128x1xf32>
    %23 = arith.subf %21, %22 : vector<128x1xf32>
    %cst_11 = arith.constant 0.000000e+00 : f32
    %24 = vector.broadcast %cst_11 : f32 to vector<128x1xf32>
    %25 = arith.maximumf %23, %24 : vector<128x1xf32>
    %cst_12 = arith.constant 9.99999974E-6 : f32
    %26 = vector.broadcast %cst_12 : f32 to vector<128x1xf32>
    %27 = arith.addf %25, %26 : vector<128x1xf32>
    %28 = math.rsqrt %27 : vector<128x1xf32>
    %29 = vector.broadcast %19 : vector<128x1xf32> to vector<128x64xf32>
    %30 = arith.subf %2, %29 : vector<128x64xf32>
    %31 = vector.broadcast %28 : vector<128x1xf32> to vector<128x64xf32>
    %32 = arith.mulf %30, %31 : vector<128x64xf32>
    %c0_13 = arith.constant 0 : index
    %c0_14 = arith.constant 0 : index
    %33 = vector.load %arg2[%c0_13, %c0_14] : memref<64x64xf32, #tpu.memory_space<vmem>>, vector<64x64xf32>
    %cst_15 = arith.constant dense<0.000000e+00> : vector<128x64xf32>
    %34 = tpu.matmul %32, %33, %cst_15 {dimension_numbers = #tpu.dot_dimension_numbers<[1], [0], [0], [1], [0, 0, 1, 1], [], []>} : vector<128x64xf32>, vector<64x64xf32>, vector<128x64xf32> -> vector<128x64xf32>
    %35 = vector.broadcast %19 : vector<128x1xf32> to vector<128x64xf32>
    %36 = arith.subf %5, %35 : vector<128x64xf32>
    %37 = vector.broadcast %28 : vector<128x1xf32> to vector<128x64xf32>
    %38 = arith.mulf %36, %37 : vector<128x64xf32>
    %c0_16 = arith.constant 0 : index
    %c0_17 = arith.constant 0 : index
    %39 = vector.load %arg3[%c0_16, %c0_17] : memref<64x64xf32, #tpu.memory_space<vmem>>, vector<64x64xf32>
    %cst_18 = arith.constant dense<0.000000e+00> : vector<128x64xf32>
    %40 = tpu.matmul %38, %39, %cst_18 {dimension_numbers = #tpu.dot_dimension_numbers<[1], [0], [0], [1], [0, 0, 1, 1], [], []>} : vector<128x64xf32>, vector<64x64xf32>, vector<128x64xf32> -> vector<128x64xf32>
    %41 = arith.addf %34, %40 : vector<128x64xf32>
    %c0_19 = arith.constant 0 : index
    %c0_20 = arith.constant 0 : index
    %42 = vector.load %arg4[%c0_19, %c0_20] : memref<1x64xf32, #tpu.memory_space<vmem>>, vector<1x64xf32>
    %43 = vector.broadcast %42 : vector<1x64xf32> to vector<128x64xf32>
    %44 = arith.addf %41, %43 : vector<128x64xf32>
    %c0_21 = arith.constant 0 : index
    %c0_22 = arith.constant 0 : index
    %45 = vector.load %arg5[%c0_21, %c0_22] : memref<128x64xf32, #tpu.memory_space<vmem>>, vector<128x64xf32>
    tpu.vector_store %arg5[%c0_21, %c0_22], %44 {strides = array<i32>} : memref<128x64xf32, #tpu.memory_space<vmem>>, vector<128x64xf32>,
    return
  }
  func.func @transform_0(%arg0: i32) -> (i32, i32, i32, i32) {
    %c0_i32 = arith.constant 0 : i32
    %c0_i32_0 = arith.constant 0 : i32
    %c0_i32_1 = arith.constant 0 : i32
    %c0_i32_2 = arith.constant 0 : i32
    return %arg0, %c0_i32, %c0_i32_0, %c0_i32_1 : i32, i32, i32, i32
  }
  func.func @transform_1(%arg0: i32) -> (i32, i32) {
    %c0_i32 = arith.constant 0 : i32
    %c0_i32_0 = arith.constant 0 : i32
    %c0_i32_1 = arith.constant 0 : i32
    return %c0_i32, %c0_i32_0 : i32, i32
  }
  func.func @transform_2(%arg0: i32) -> (i32, i32) {
    %c0_i32 = arith.constant 0 : i32
    %c0_i32_0 = arith.constant 0 : i32
    %c0_i32_1 = arith.constant 0 : i32
    return %c0_i32, %c0_i32_0 : i32, i32
  }
  func.func @transform_3(%arg0: i32) -> (i32, i32) {
    %c0_i32 = arith.constant 0 : i32
    %c0_i32_0 = arith.constant 0 : i32
    %c0_i32_1 = arith.constant 0 : i32
    return %c0_i32, %c0_i32_0 : i32, i32
  }
  func.func @transform_4(%arg0: i32) -> (i32, i32) {
    %c0_i32 = arith.constant 0 : i32
    %c0_i32_0 = arith.constant 0 : i32
    return %arg0, %c0_i32 : i32, i32
  }
}

module attributes {stable_mosaic.version = 11 : i64} {
  func.func @_patch_merge_kernel(%arg0: i32, %arg1: memref<16x2x8x64xf32, #tpu.memory_space<vmem>>, %arg2: memref<64x64xf32, #tpu.memory_space<vmem>>, %arg3: memref<64x64xf32, #tpu.memory_space<vmem>>, %arg4: memref<1x64xf32, #tpu.memory_space<vmem>>, %arg5: memref<128x64xf32, #tpu.memory_space<vmem>>) attributes {dimension_semantics = [#tpu.dimension_semantics<parallel>], iteration_bounds = array<i64: 1>, scalar_prefetch = 0 : i64, scratch_operands = 0 : i64, tpu.core_type = #tpu.core_type<tc>, window_params = [{transform_indices = @transform_0, window_bounds = array<i64: 16, 2, 8, 64>}, {pipeline_mode = #tpu.pipeline_mode<synchronous>, transform_indices = @transform_1, window_bounds = array<i64: 64, 64>}, {pipeline_mode = #tpu.pipeline_mode<synchronous>, transform_indices = @transform_2, window_bounds = array<i64: 64, 64>}, {pipeline_mode = #tpu.pipeline_mode<synchronous>, transform_indices = @transform_3, window_bounds = array<i64: 1, 64>}, {transform_indices = @transform_4, window_bounds = array<i64: 128, 64>}]} {
    %c0 = arith.constant 0 : index
    %c0_0 = arith.constant 0 : index
    %c0_1 = arith.constant 0 : index
    %c0_2 = arith.constant 0 : index
    %0 = vector.load %arg1[%c0, %c0_0, %c0_1, %c0_2] : memref<16x2x8x64xf32, #tpu.memory_space<vmem>>, vector<16x1x8x64xf32>
    %1 = vector.shape_cast %0 : vector<16x1x8x64xf32> to vector<16x8x64xf32>
    %2 = vector.shape_cast %1 : vector<16x8x64xf32> to vector<128x64xf32>
    %c0_3 = arith.constant 0 : index
    %c1 = arith.constant 1 : index
    %c0_4 = arith.constant 0 : index
    %c0_5 = arith.constant 0 : index
    %3 = vector.load %arg1[%c0_3, %c1, %c0_4, %c0_5] : memref<16x2x8x64xf32, #tpu.memory_space<vmem>>, vector<16x1x8x64xf32>
    %4 = vector.shape_cast %3 : vector<16x1x8x64xf32> to vector<16x8x64xf32>
    %5 = vector.shape_cast %4 : vector<16x8x64xf32> to vector<128x64xf32>
    %cst = arith.constant dense<0.000000e+00> : vector<128xf32>
    %6 = vector.multi_reduction <add>, %2, %cst [1] : vector<128x64xf32> to vector<128xf32>
    %7 = vector.shape_cast %6 : vector<128xf32> to vector<128x1xf32>
    %cst_6 = arith.constant dense<0.000000e+00> : vector<128xf32>
    %8 = vector.multi_reduction <add>, %5, %cst_6 [1] : vector<128x64xf32> to vector<128xf32>
    %9 = vector.shape_cast %8 : vector<128xf32> to vector<128x1xf32>
    %10 = arith.addf %7, %9 : vector<128x1xf32>
    %11 = arith.mulf %2, %2 : vector<128x64xf32>
    %cst_7 = arith.constant dense<0.000000e+00> : vector<128xf32>
    %12 = vector.multi_reduction <add>, %11, %cst_7 [1] : vector<128x64xf32> to vector<128xf32>
    %13 = vector.shape_cast %12 : vector<128xf32> to vector<128x1xf32>
    %14 = arith.mulf %5, %5 : vector<128x64xf32>
    %cst_8 = arith.constant dense<0.000000e+00> : vector<128xf32>
    %15 = vector.multi_reduction <add>, %14, %cst_8 [1] : vector<128x64xf32> to vector<128xf32>
    %16 = vector.shape_cast %15 : vector<128xf32> to vector<128x1xf32>
    %17 = arith.addf %13, %16 : vector<128x1xf32>
    %cst_9 = arith.constant 7.812500e-03 : f32
    %18 = vector.broadcast %cst_9 : f32 to vector<128x1xf32>
    %19 = arith.mulf %10, %18 : vector<128x1xf32>
    %cst_10 = arith.constant 7.812500e-03 : f32
    %20 = vector.broadcast %cst_10 : f32 to vector<128x1xf32>
    %21 = arith.mulf %17, %20 : vector<128x1xf32>
    %22 = arith.mulf %19, %19 : vector<128x1xf32>
    %23 = arith.subf %21, %22 : vector<128x1xf32>
    %cst_11 = arith.constant 0.000000e+00 : f32
    %24 = vector.broadcast %cst_11 : f32 to vector<128x1xf32>
    %25 = arith.maximumf %23, %24 : vector<128x1xf32>
    %cst_12 = arith.constant 9.99999974E-6 : f32
    %26 = vector.broadcast %cst_12 : f32 to vector<128x1xf32>
    %27 = arith.addf %25, %26 : vector<128x1xf32>
    %28 = math.rsqrt %27 : vector<128x1xf32>
    %29 = vector.broadcast %19 : vector<128x1xf32> to vector<128x64xf32>
    %30 = arith.subf %2, %29 : vector<128x64xf32>
    %31 = vector.broadcast %28 : vector<128x1xf32> to vector<128x64xf32>
    %32 = arith.mulf %30, %31 : vector<128x64xf32>
    %c0_13 = arith.constant 0 : index
    %c0_14 = arith.constant 0 : index
    %33 = vector.load %arg2[%c0_13, %c0_14] : memref<64x64xf32, #tpu.memory_space<vmem>>, vector<64x64xf32>
    %cst_15 = arith.constant dense<0.000000e+00> : vector<128x64xf32>
    %34 = tpu.matmul %32, %33, %cst_15 {dimension_numbers = #tpu.dot_dimension_numbers<[1], [0], [0], [1], [0, 0, 1, 1], [], []>} : vector<128x64xf32>, vector<64x64xf32>, vector<128x64xf32> -> vector<128x64xf32>
    %35 = vector.broadcast %19 : vector<128x1xf32> to vector<128x64xf32>
    %36 = arith.subf %5, %35 : vector<128x64xf32>
    %37 = vector.broadcast %28 : vector<128x1xf32> to vector<128x64xf32>
    %38 = arith.mulf %36, %37 : vector<128x64xf32>
    %c0_16 = arith.constant 0 : index
    %c0_17 = arith.constant 0 : index
    %39 = vector.load %arg3[%c0_16, %c0_17] : memref<64x64xf32, #tpu.memory_space<vmem>>, vector<64x64xf32>
    %cst_18 = arith.constant dense<0.000000e+00> : vector<128x64xf32>
    %40 = tpu.matmul %38, %39, %cst_18 {dimension_numbers = #tpu.dot_dimension_numbers<[1], [0], [0], [1], [0, 0, 1, 1], [], []>} : vector<128x64xf32>, vector<64x64xf32>, vector<128x64xf32> -> vector<128x64xf32>
    %41 = arith.addf %34, %40 : vector<128x64xf32>
    %c0_19 = arith.constant 0 : index
    %c0_20 = arith.constant 0 : index
    %42 = vector.load %arg4[%c0_19, %c0_20] : memref<1x64xf32, #tpu.memory_space<vmem>>, vector<1x64xf32>
    %43 = vector.broadcast %42 : vector<1x64xf32> to vector<128x64xf32>
    %44 = arith.addf %41, %43 : vector<128x64xf32>
    %c0_21 = arith.constant 0 : index
    %c0_22 = arith.constant 0 : index
    %45 = vector.load %arg5[%c0_21, %c0_22] : memref<128x64xf32, #tpu.memory_space<vmem>>, vector<128x64xf32>
    tpu.vector_store %arg5[%c0_21, %c0_22], %44 {strides = array<i32>} : memref<128x64xf32, #tpu.memory_space<vmem>>, vector<128x64xf32>,
    return
  }
  func.func @transform_0(%arg0: i32) -> (i32, i32, i32, i32) {
    %c0_i32 = arith.constant 0 : i32
    %c0_i32_0 = arith.constant 0 : i32
    %c0_i32_1 = arith.constant 0 : i32
    %c0_i32_2 = arith.constant 0 : i32
    return %arg0, %c0_i32, %c0_i32_0, %c0_i32_1 : i32, i32, i32, i32
  }
  func.func @transform_1(%arg0: i32) -> (i32, i32) {
    %c0_i32 = arith.constant 0 : i32
    %c0_i32_0 = arith.constant 0 : i32
    %c0_i32_1 = arith.constant 0 : i32
    return %c0_i32, %c0_i32_0 : i32, i32
  }
  func.func @transform_2(%arg0: i32) -> (i32, i32) {
    %c0_i32 = arith.constant 0 : i32
    %c0_i32_0 = arith.constant 0 : i32
    %c0_i32_1 = arith.constant 0 : i32
    return %c0_i32, %c0_i32_0 : i32, i32
  }
  func.func @transform_3(%arg0: i32) -> (i32, i32) {
    %c0_i32 = arith.constant 0 : i32
    %c0_i32_0 = arith.constant 0 : i32
    %c0_i32_1 = arith.constant 0 : i32
    return %c0_i32, %c0_i32_0 : i32, i32
  }
  func.func @transform_4(%arg0: i32) -> (i32, i32) {
    %c0_i32 = arith.constant 0 : i32
    %c0_i32_0 = arith.constant 0 : i32
    return %arg0, %c0_i32 : i32, i32
  }
}

</mosaic_0001>

<llo_original>
// kernel: tpu_custom_call.1
$region0: #{tpu_custom_call.1}
  #allocation0 [shape = 'u32[]', space=smem, size = 0x4, offset = 0x4, fixed_abs, tag = 'smem constant byte address 0x4 - core index']
  #allocation1 [shape = 'u32[144,128]{1,0:T(1,128)}', space=vmem, size = 0x12000, scoped, tag = 'internal scratch']
  %s0 = inlined_call_operand.hbm [shape: f32[16,2,8,64], index: 0, kind: input, shape index: {}]
  %s1 = inlined_call_operand.hbm [shape: f32[64,64], index: 1, kind: input, shape index: {}]
  %s2 = inlined_call_operand.hbm [shape: f32[64,64], index: 2, kind: input, shape index: {}]
  %s3 = inlined_call_operand.hbm [shape: f32[1,64], index: 3, kind: input, shape index: {}]
  %s4 = inlined_call_operand.hbm [shape: f32[128,64], index: 4, kind: output, shape index: {}]
  %s5 = sld [smem:[#allocation0]]
  $region42: #{tpu_custom_call.1} parent=0
    _
  %s7 = ssub.s32 1, %s5
  %s8 = scalar_select 0, %s7, %s5
  $region1: #{tpu_custom_call.1} parent=0
    #allocation2 [shape = 'u8[131072]{0}', space=vmem, size = 0x20000, scoped, tag = 'input window, operand 0, single buffered']
    #allocation3 [shape = 's32[1]{0}', space=sflag, size = 0x4, scoped, tag = 'scoped memory for tpu_custom_call.1']
    #allocation4 [shape = 's32[1]{0}', space=sflag, size = 0x4, scoped, tag = 'scoped memory for tpu_custom_call.1']
    #allocation5 [shape = 'u8[32768]{0}', space=vmem, size = 0x8000, scoped, tag = 'input window, operand 1, single buffered']
    #allocation6 [shape = 's32[1]{0}', space=sflag, size = 0x4, scoped, tag = 'scoped memory for tpu_custom_call.1']
    #allocation7 [shape = 'u8[32768]{0}', space=vmem, size = 0x8000, scoped, tag = 'input window, operand 2, single buffered']
    #allocation8 [shape = 'u8[512]{0}', space=vmem, size = 0x400, scoped, tag = 'input window, operand 3, single buffered']
    #allocation9 [shape = 's32[1]{0}', space=sflag, size = 0x4, scoped, tag = 'scoped memory for tpu_custom_call.1']
    #allocation10 [shape = 'u8[65536]{0}', space=vmem, size = 0x10000, scoped, tag = 'output window, operand 0, single buffered']
    %9 = vsyncpa [#allocation3], 0
    %10 = vsyncpa [#allocation6], 0
    %11 = vsyncpa [#allocation9], 0
    %12 = vsyncpa [#allocation4], 0
    // Predicated region
    $region2: #{tpu_custom_call.1} parent=1 // pred_check
      _
    $region3: #{tpu_custom_call.1} parent=1 // pred_check_branch
      %14 = sbr.rel (0) target = $region5
    $region4: #{tpu_custom_call.1} parent=1 // pred_region
      %s16 = ssub.s32 4096, 4096
      %17 = vsyncadd [#allocation3], %s16
      %s18 = sshll.u32 [#allocation2], 4
      %s19 = int_to_ptr.vmem [resolvable:$true] %s18
      %24 = dma.hbm_to_vmem [thread:$0]  %s0, 4096, %s19, [#allocation3], 128, 128, 8
    $region5: #{tpu_custom_call.1} parent=1 // pred_fallthru
      _
    // Predicated region
    $region6: #{tpu_custom_call.1} parent=1 // pred_check
      _
    $region7: #{tpu_custom_call.1} parent=1 // pred_check_branch
      %26 = sbr.rel (0) target = $region9
    $region8: #{tpu_custom_call.1} parent=1 // pred_region
      %s28 = ssub.s32 1024, 1024
      %29 = vsyncadd [#allocation6], %s28
      %s30 = sshll.u32 [#allocation5], 4
      %s31 = int_to_ptr.vmem [resolvable:$true] %s30
      %36 = dma.hbm_to_vmem [thread:$0]  %s1, 1024, %s31, [#allocation6], 128, 128, 8
    $region9: #{tpu_custom_call.1} parent=1 // pred_fallthru
      _
    // Predicated region
    $region10: #{tpu_custom_call.1} parent=1 // pred_check
      _
    $region11: #{tpu_custom_call.1} parent=1 // pred_check_branch
      %38 = sbr.rel (0) target = $region13
    $region12: #{tpu_custom_call.1} parent=1 // pred_region
      %s40 = ssub.s32 1024, 1024
      %41 = vsyncadd [#allocation6], %s40
      %s42 = sshll.u32 [#allocation7], 4
      %s43 = int_to_ptr.vmem [resolvable:$true] %s42
      %48 = dma.hbm_to_vmem [thread:$0]  %s2, 1024, %s43, [#allocation6], 128, 128, 8
    $region13: #{tpu_custom_call.1} parent=1 // pred_fallthru
      _
    // Predicated region
    $region14: #{tpu_custom_call.1} parent=1 // pred_check
      _
    $region15: #{tpu_custom_call.1} parent=1 // pred_check_branch
      %50 = sbr.rel (0) target = $region17
    $region16: #{tpu_custom_call.1} parent=1 // pred_region
      %s52 = ssub.s32 16, 16
      %53 = vsyncadd [#allocation9], %s52
      %s55 = sshll.u32 [#allocation8], 4
      %s56 = int_to_ptr.vmem [resolvable:$true] %s55
      %58 = dma.hbm_to_vmem [thread:$0]  %s3, 16, %s56, [#allocation9]
    $region17: #{tpu_custom_call.1} parent=1 // pred_fallthru
      _
    // Predicated region
    $region18: #{tpu_custom_call.1} parent=1 // pred_check
      _
    $region19: #{tpu_custom_call.1} parent=1 // pred_check_branch
      %60 = sbr.rel (0) target = $region21
    $region20: #{tpu_custom_call.1} parent=1 // pred_region
      %61 = dma.done [#allocation3], 4096
    $region21: #{tpu_custom_call.1} parent=1 // pred_fallthru
      _
    // Predicated region
    $region22: #{tpu_custom_call.1} parent=1 // pred_check
      _
    $region23: #{tpu_custom_call.1} parent=1 // pred_check_branch
      %63 = sbr.rel (0) target = $region25
    $region24: #{tpu_custom_call.1} parent=1 // pred_region
      %64 = dma.done [#allocation6], 1024
    $region25: #{tpu_custom_call.1} parent=1 // pred_fallthru
      _
    // Predicated region
    $region26: #{tpu_custom_call.1} parent=1 // pred_check
      _
    $region27: #{tpu_custom_call.1} parent=1 // pred_check_branch
      %66 = sbr.rel (0) target = $region29
    $region28: #{tpu_custom_call.1} parent=1 // pred_region
      %67 = dma.done [#allocation6], 1024
    $region29: #{tpu_custom_call.1} parent=1 // pred_fallthru
      _
    // Predicated region
    $region30: #{tpu_custom_call.1} parent=1 // pred_check
      _
    $region31: #{tpu_custom_call.1} parent=1 // pred_check_branch
      %69 = sbr.rel (0) target = $region33
    $region32: #{tpu_custom_call.1} parent=1 // pred_region
      %70 = dma.done [#allocation9], 16
    $region33: #{tpu_custom_call.1} parent=1 // pred_fallthru
      _
    %v71 = vld [vmem:[#allocation2] sm:$0xff]
    %v72 = vld [vmem:[#allocation2 + $0x10] sm:$0xff]
    %v73 = vld [vmem:[#allocation2 + $0x20] sm:$0xff]
    %v74 = vld [vmem:[#allocation2 + $0x30] sm:$0xff]
    %v75 = vld [vmem:[#allocation2 + $0x40] sm:$0xff]
    %v76 = vld [vmem:[#allocation2 + $0x50] sm:$0xff]
    %v77 = vld [vmem:[#allocation2 + $0x60] sm:$0xff]
    %v78 = vld [vmem:[#allocation2 + $0x70] sm:$0xff]
    %v79 = vld [vmem:[#allocation2 + $0x80] sm:$0xff]
    %v80 = vld [vmem:[#allocation2 + $0x90] sm:$0xff]
    %v81 = vld [vmem:[#allocation2 + $0xa0] sm:$0xff]
    %v82 = vld [vmem:[#allocation2 + $0xb0] sm:$0xff]
    %v83 = vld [vmem:[#allocation2 + $0xc0] sm:$0xff]
    %v84 = vld [vmem:[#allocation2 + $0xd0] sm:$0xff]
    %v85 = vld [vmem:[#allocation2 + $0xe0] sm:$0xff]
    %v86 = vld [vmem:[#allocation2 + $0xf0] sm:$0xff]
    %s87 = scalar_lea.vmem [#allocation2], 8
    %v88 = vld [vmem:[%s87] sm:$0xff]
    %v89 = vld [vmem:[%s87 + $0x10] sm:$0xff]
    %v90 = vld [vmem:[%s87 + $0x20] sm:$0xff]
    %v91 = vld [vmem:[%s87 + $0x30] sm:$0xff]
    %v92 = vld [vmem:[%s87 + $0x40] sm:$0xff]
    %v93 = vld [vmem:[%s87 + $0x50] sm:$0xff]
    %v94 = vld [vmem:[%s87 + $0x60] sm:$0xff]
    %v95 = vld [vmem:[%s87 + $0x70] sm:$0xff]
    %v96 = vld [vmem:[%s87 + $0x80] sm:$0xff]
    %v97 = vld [vmem:[%s87 + $0x90] sm:$0xff]
    %v98 = vld [vmem:[%s87 + $0xa0] sm:$0xff]
    %v99 = vld [vmem:[%s87 + $0xb0] sm:$0xff]
    %v100 = vld [vmem:[%s87 + $0xc0] sm:$0xff]
    %v101 = vld [vmem:[%s87 + $0xd0] sm:$0xff]
    %v102 = vld [vmem:[%s87 + $0xe0] sm:$0xff]
    %v103 = vld [vmem:[%s87 + $0xf0] sm:$0xff]
    %vm104 = vcmask 523264
    %v105 = vsel %vm104, %v71, 0.0
    %106 = vadd.xlane.f32.xlu0 %v105
    %v107 = vpop.xlane.xlu0 %106
    %v108 = vsel %vm104, %v72, 0.0
    %109 = vadd.xlane.f32.xlu0 %v108
    %v110 = vpop.xlane.xlu0 %109
    %v111 = vsel %vm104, %v73, 0.0
    %112 = vadd.xlane.f32.xlu0 %v111
    %v113 = vpop.xlane.xlu0 %112
    %v114 = vsel %vm104, %v74, 0.0
    %115 = vadd.xlane.f32.xlu0 %v114
    %v116 = vpop.xlane.xlu0 %115
    %v117 = vsel %vm104, %v75, 0.0
    %118 = vadd.xlane.f32.xlu0 %v117
    %v119 = vpop.xlane.xlu0 %118
    %v120 = vsel %vm104, %v76, 0.0
    %121 = vadd.xlane.f32.xlu0 %v120
    %v122 = vpop.xlane.xlu0 %121
    %v123 = vsel %vm104, %v77, 0.0
    %124 = vadd.xlane.f32.xlu0 %v123
    %v125 = vpop.xlane.xlu0 %124
    %v126 = vsel %vm104, %v78, 0.0
    %127 = vadd.xlane.f32.xlu0 %v126
    %v128 = vpop.xlane.xlu0 %127
    %v129 = vsel %vm104, %v79, 0.0
    %130 = vadd.xlane.f32.xlu0 %v129
    %v131 = vpop.xlane.xlu0 %130
    %v132 = vsel %vm104, %v80, 0.0
    %133 = vadd.xlane.f32.xlu0 %v132
    %v134 = vpop.xlane.xlu0 %133
    %v135 = vsel %vm104, %v81, 0.0
    %136 = vadd.xlane.f32.xlu0 %v135
    %v137 = vpop.xlane.xlu0 %136
    %v138 = vsel %vm104, %v82, 0.0
    %139 = vadd.xlane.f32.xlu0 %v138
    %v140 = vpop.xlane.xlu0 %139
    %v141 = vsel %vm104, %v83, 0.0
    %142 = vadd.xlane.f32.xlu0 %v141
    %v143 = vpop.xlane.xlu0 %142
    %v144 = vsel %vm104, %v84, 0.0
    %145 = vadd.xlane.f32.xlu0 %v144
    %v146 = vpop.xlane.xlu0 %145
    %v147 = vsel %vm104, %v85, 0.0
    %148 = vadd.xlane.f32.xlu0 %v147
    %v149 = vpop.xlane.xlu0 %148
    %v150 = vsel %vm104, %v86, 0.0
    %151 = vadd.xlane.f32.xlu0 %v150
    %v152 = vpop.xlane.xlu0 %151
    %v153 = vsel %vm104, %v88, 0.0
    %154 = vadd.xlane.f32.xlu0 %v153
    %v155 = vpop.xlane.xlu0 %154
    %v156 = vsel %vm104, %v89, 0.0
    %157 = vadd.xlane.f32.xlu0 %v156
    %v158 = vpop.xlane.xlu0 %157
    %v159 = vsel %vm104, %v90, 0.0
    %160 = vadd.xlane.f32.xlu0 %v159
    %v161 = vpop.xlane.xlu0 %160
    %v162 = vsel %vm104, %v91, 0.0
    %163 = vadd.xlane.f32.xlu0 %v162
    %v164 = vpop.xlane.xlu0 %163
    %v165 = vsel %vm104, %v92, 0.0
    %166 = vadd.xlane.f32.xlu0 %v165
    %v167 = vpop.xlane.xlu0 %166
    %v168 = vsel %vm104, %v93, 0.0
    %169 = vadd.xlane.f32.xlu0 %v168
    %v170 = vpop.xlane.xlu0 %169
    %v171 = vsel %vm104, %v94, 0.0
    %172 = vadd.xlane.f32.xlu0 %v171
    %v173 = vpop.xlane.xlu0 %172
    %v174 = vsel %vm104, %v95, 0.0
    %175 = vadd.xlane.f32.xlu0 %v174
    %v176 = vpop.xlane.xlu0 %175
    %v177 = vsel %vm104, %v96, 0.0
    %178 = vadd.xlane.f32.xlu0 %v177
    %v179 = vpop.xlane.xlu0 %178
    %v180 = vsel %vm104, %v97, 0.0
    %181 = vadd.xlane.f32.xlu0 %v180
    %v182 = vpop.xlane.xlu0 %181
    %v183 = vsel %vm104, %v98, 0.0
    %184 = vadd.xlane.f32.xlu0 %v183
    %v185 = vpop.xlane.xlu0 %184
    %v186 = vsel %vm104, %v99, 0.0
    %187 = vadd.xlane.f32.xlu0 %v186
    %v188 = vpop.xlane.xlu0 %187
    %v189 = vsel %vm104, %v100, 0.0
    %190 = vadd.xlane.f32.xlu0 %v189
    %v191 = vpop.xlane.xlu0 %190
    %v192 = vsel %vm104, %v101, 0.0
    %193 = vadd.xlane.f32.xlu0 %v192
    %v194 = vpop.xlane.xlu0 %193
    %v195 = vsel %vm104, %v102, 0.0
    %196 = vadd.xlane.f32.xlu0 %v195
    %v197 = vpop.xlane.xlu0 %196
    %v198 = vsel %vm104, %v103, 0.0
    %199 = vadd.xlane.f32.xlu0 %v198
    %v200 = vpop.xlane.xlu0 %199
    %v201 = vadd.f32 %v107, %v155
    %v202 = vadd.f32 %v110, %v158
    %v203 = vadd.f32 %v113, %v161
    %v204 = vadd.f32 %v116, %v164
    %v205 = vadd.f32 %v119, %v167
    %v206 = vadd.f32 %v122, %v170
    %v207 = vadd.f32 %v125, %v173
    %v208 = vadd.f32 %v128, %v176
    %v209 = vadd.f32 %v131, %v179
    %v210 = vadd.f32 %v134, %v182
    %v211 = vadd.f32 %v137, %v185
    %v212 = vadd.f32 %v140, %v188
    %v213 = vadd.f32 %v143, %v191
    %v214 = vadd.f32 %v146, %v194
    %v215 = vadd.f32 %v149, %v197
    %v216 = vadd.f32 %v152, %v200
    %v217 = vmul.f32 %v71, %v71
    %v218 = vmul.f32 %v72, %v72
    %v219 = vmul.f32 %v73, %v73
    %v220 = vmul.f32 %v74, %v74
    %v221 = vmul.f32 %v75, %v75
    %v222 = vmul.f32 %v76, %v76
    %v223 = vmul.f32 %v77, %v77
    %v224 = vmul.f32 %v78, %v78
    %v225 = vmul.f32 %v79, %v79
    %v226 = vmul.f32 %v80, %v80
    %v227 = vmul.f32 %v81, %v81
    %v228 = vmul.f32 %v82, %v82
    %v229 = vmul.f32 %v83, %v83
    %v230 = vmul.f32 %v84, %v84
    %v231 = vmul.f32 %v85, %v85
    %v232 = vmul.f32 %v86, %v86
    %v233 = vsel %vm104, %v217, 0.0
    %234 = vadd.xlane.f32.xlu0 %v233
    %v235 = vpop.xlane.xlu0 %234
    %v236 = vsel %vm104, %v218, 0.0
    %237 = vadd.xlane.f32.xlu0 %v236
    %v238 = vpop.xlane.xlu0 %237
    %v239 = vsel %vm104, %v219, 0.0
    %240 = vadd.xlane.f32.xlu0 %v239
    %v241 = vpop.xlane.xlu0 %240
    %v242 = vsel %vm104, %v220, 0.0
    %243 = vadd.xlane.f32.xlu0 %v242
    %v244 = vpop.xlane.xlu0 %243
    %v245 = vsel %vm104, %v221, 0.0
    %246 = vadd.xlane.f32.xlu0 %v245
    %v247 = vpop.xlane.xlu0 %246
    %v248 = vsel %vm104, %v222, 0.0
    %249 = vadd.xlane.f32.xlu0 %v248
    %v250 = vpop.xlane.xlu0 %249
    %v251 = vsel %vm104, %v223, 0.0
    %252 = vadd.xlane.f32.xlu0 %v251
    %v253 = vpop.xlane.xlu0 %252
    %v254 = vsel %vm104, %v224, 0.0
    %255 = vadd.xlane.f32.xlu0 %v254
    %v256 = vpop.xlane.xlu0 %255
    %v257 = vsel %vm104, %v225, 0.0
    %258 = vadd.xlane.f32.xlu0 %v257
    %v259 = vpop.xlane.xlu0 %258
    %v260 = vsel %vm104, %v226, 0.0
    %261 = vadd.xlane.f32.xlu0 %v260
    %v262 = vpop.xlane.xlu0 %261
    %v263 = vsel %vm104, %v227, 0.0
    %264 = vadd.xlane.f32.xlu0 %v263
    %v265 = vpop.xlane.xlu0 %264
    %v266 = vsel %vm104, %v228, 0.0
    %267 = vadd.xlane.f32.xlu0 %v266
    %v268 = vpop.xlane.xlu0 %267
    %v269 = vsel %vm104, %v229, 0.0
    %270 = vadd.xlane.f32.xlu0 %v269
    %v271 = vpop.xlane.xlu0 %270
    %v272 = vsel %vm104, %v230, 0.0
    %273 = vadd.xlane.f32.xlu0 %v272
    %v274 = vpop.xlane.xlu0 %273
    %v275 = vsel %vm104, %v231, 0.0
    %276 = vadd.xlane.f32.xlu0 %v275
    %v277 = vpop.xlane.xlu0 %276
    %v278 = vsel %vm104, %v232, 0.0
    %279 = vadd.xlane.f32.xlu0 %v278
    %v280 = vpop.xlane.xlu0 %279
    %v281 = vmul.f32 %v88, %v88
    %v282 = vmul.f32 %v89, %v89
    %v283 = vmul.f32 %v90, %v90
    %v284 = vmul.f32 %v91, %v91
    %v285 = vmul.f32 %v92, %v92
    %v286 = vmul.f32 %v93, %v93
    %v287 = vmul.f32 %v94, %v94
    %v288 = vmul.f32 %v95, %v95
    %v289 = vmul.f32 %v96, %v96
    %v290 = vmul.f32 %v97, %v97
    %v291 = vmul.f32 %v98, %v98
    %v292 = vmul.f32 %v99, %v99
    %v293 = vmul.f32 %v100, %v100
    %v294 = vmul.f32 %v101, %v101
    %v295 = vmul.f32 %v102, %v102
    %v296 = vmul.f32 %v103, %v103
    %v297 = vsel %vm104, %v281, 0.0
    %298 = vadd.xlane.f32.xlu0 %v297
    %v299 = vpop.xlane.xlu0 %298
    %v300 = vsel %vm104, %v282, 0.0
    %301 = vadd.xlane.f32.xlu0 %v300
    %v302 = vpop.xlane.xlu0 %301
    %v303 = vsel %vm104, %v283, 0.0
    %304 = vadd.xlane.f32.xlu0 %v303
    %v305 = vpop.xlane.xlu0 %304
    %v306 = vsel %vm104, %v284, 0.0
    %307 = vadd.xlane.f32.xlu0 %v306
    %v308 = vpop.xlane.xlu0 %307
    %v309 = vsel %vm104, %v285, 0.0
    %310 = vadd.xlane.f32.xlu0 %v309
    %v311 = vpop.xlane.xlu0 %310
    %v312 = vsel %vm104, %v286, 0.0
    %313 = vadd.xlane.f32.xlu0 %v312
    %v314 = vpop.xlane.xlu0 %313
    %v315 = vsel %vm104, %v287, 0.0
    %316 = vadd.xlane.f32.xlu0 %v315
    %v317 = vpop.xlane.xlu0 %316
    %v318 = vsel %vm104, %v288, 0.0
    %319 = vadd.xlane.f32.xlu0 %v318
    %v320 = vpop.xlane.xlu0 %319
    %v321 = vsel %vm104, %v289, 0.0
    %322 = vadd.xlane.f32.xlu0 %v321
    %v323 = vpop.xlane.xlu0 %322
    %v324 = vsel %vm104, %v290, 0.0
    %325 = vadd.xlane.f32.xlu0 %v324
    %v326 = vpop.xlane.xlu0 %325
    %v327 = vsel %vm104, %v291, 0.0
    %328 = vadd.xlane.f32.xlu0 %v327
    %v329 = vpop.xlane.xlu0 %328
    %v330 = vsel %vm104, %v292, 0.0
    %331 = vadd.xlane.f32.xlu0 %v330
    %v332 = vpop.xlane.xlu0 %331
    %v333 = vsel %vm104, %v293, 0.0
    %334 = vadd.xlane.f32.xlu0 %v333
    %v335 = vpop.xlane.xlu0 %334
    %v336 = vsel %vm104, %v294, 0.0
    %337 = vadd.xlane.f32.xlu0 %v336
    %v338 = vpop.xlane.xlu0 %337
    %v339 = vsel %vm104, %v295, 0.0
    %340 = vadd.xlane.f32.xlu0 %v339
    %v341 = vpop.xlane.xlu0 %340
    %v342 = vsel %vm104, %v296, 0.0
    %343 = vadd.xlane.f32.xlu0 %v342
    %v344 = vpop.xlane.xlu0 %343
    %v345 = vadd.f32 %v235, %v299
    %v346 = vadd.f32 %v238, %v302
    %v347 = vadd.f32 %v241, %v305
    %v348 = vadd.f32 %v244, %v308
    %v349 = vadd.f32 %v247, %v311
    %v350 = vadd.f32 %v250, %v314
    %v351 = vadd.f32 %v253, %v317
    %v352 = vadd.f32 %v256, %v320
    %v353 = vadd.f32 %v259, %v323
    %v354 = vadd.f32 %v262, %v326
    %v355 = vadd.f32 %v265, %v329
    %v356 = vadd.f32 %v268, %v332
    %v357 = vadd.f32 %v271, %v335
    %v358 = vadd.f32 %v274, %v338
    %v359 = vadd.f32 %v277, %v341
    %v360 = vadd.f32 %v280, %v344
    %v361 = vmul.f32 %v201, 0.0078125
    %v362 = vmul.f32 %v202, 0.0078125
    %v363 = vmul.f32 %v203, 0.0078125
    %v364 = vmul.f32 %v204, 0.0078125
    %v365 = vmul.f32 %v205, 0.0078125
    %v366 = vmul.f32 %v206, 0.0078125
    %v367 = vmul.f32 %v207, 0.0078125
    %v368 = vmul.f32 %v208, 0.0078125
    %v369 = vmul.f32 %v209, 0.0078125
    %v370 = vmul.f32 %v210, 0.0078125
    %v371 = vmul.f32 %v211, 0.0078125
    %v372 = vmul.f32 %v212, 0.0078125
    %v373 = vmul.f32 %v213, 0.0078125
    %v374 = vmul.f32 %v214, 0.0078125
    %v375 = vmul.f32 %v215, 0.0078125
    %v376 = vmul.f32 %v216, 0.0078125
    %v377 = vmul.f32 %v345, 0.0078125
    %v378 = vmul.f32 %v346, 0.0078125
    %v379 = vmul.f32 %v347, 0.0078125
    %v380 = vmul.f32 %v348, 0.0078125
    %v381 = vmul.f32 %v349, 0.0078125
    %v382 = vmul.f32 %v350, 0.0078125
    %v383 = vmul.f32 %v351, 0.0078125
    %v384 = vmul.f32 %v352, 0.0078125
    %v385 = vmul.f32 %v353, 0.0078125
    %v386 = vmul.f32 %v354, 0.0078125
    %v387 = vmul.f32 %v355, 0.0078125
    %v388 = vmul.f32 %v356, 0.0078125
    %v389 = vmul.f32 %v357, 0.0078125
    %v390 = vmul.f32 %v358, 0.0078125
    %v391 = vmul.f32 %v359, 0.0078125
    %v392 = vmul.f32 %v360, 0.0078125
    %v393 = vmul.f32 %v361, %v361
    %v394 = vmul.f32 %v362, %v362
    %v395 = vmul.f32 %v363, %v363
    %v396 = vmul.f32 %v364, %v364
    %v397 = vmul.f32 %v365, %v365
    %v398 = vmul.f32 %v366, %v366
    %v399 = vmul.f32 %v367, %v367
    %v400 = vmul.f32 %v368, %v368
    %v401 = vmul.f32 %v369, %v369
    %v402 = vmul.f32 %v370, %v370
    %v403 = vmul.f32 %v371, %v371
    %v404 = vmul.f32 %v372, %v372
    %v405 = vmul.f32 %v373, %v373
    %v406 = vmul.f32 %v374, %v374
    %v407 = vmul.f32 %v375, %v375
    %v408 = vmul.f32 %v376, %v376
    %v409 = vsub.f32 %v377, %v393
    %v410 = vsub.f32 %v378, %v394
    %v411 = vsub.f32 %v379, %v395
    %v412 = vsub.f32 %v380, %v396
    %v413 = vsub.f32 %v381, %v397
    %v414 = vsub.f32 %v382, %v398
    %v415 = vsub.f32 %v383, %v399
    %v416 = vsub.f32 %v384, %v400
    %v417 = vsub.f32 %v385, %v401
    %v418 = vsub.f32 %v386, %v402
    %v419 = vsub.f32 %v387, %v403
    %v420 = vsub.f32 %v388, %v404
    %v421 = vsub.f32 %v389, %v405
    %v422 = vsub.f32 %v390, %v406
    %v423 = vsub.f32 %v391, %v407
    %v424 = vsub.f32 %v392, %v408
    %v425 = vmax.f32 %v409, 0.0
    %v426 = vmax.f32 %v410, 0.0
    %v427 = vmax.f32 %v411, 0.0
    %v428 = vmax.f32 %v412, 0.0
    %v429 = vmax.f32 %v413, 0.0
    %v430 = vmax.f32 %v414, 0.0
    %v431 = vmax.f32 %v415, 0.0
    %v432 = vmax.f32 %v416, 0.0
    %v433 = vmax.f32 %v417, 0.0
    %v434 = vmax.f32 %v418, 0.0
    %v435 = vmax.f32 %v419, 0.0
    %v436 = vmax.f32 %v420, 0.0
    %v437 = vmax.f32 %v421, 0.0
    %v438 = vmax.f32 %v422, 0.0
    %v439 = vmax.f32 %v423, 0.0
    %v440 = vmax.f32 %v424, 0.0
    %v441 = vadd.f32 %v425, 1e-05
    %v442 = vadd.f32 %v426, 1e-05
    %v443 = vadd.f32 %v427, 1e-05
    %v444 = vadd.f32 %v428, 1e-05
    %v445 = vadd.f32 %v429, 1e-05
    %v446 = vadd.f32 %v430, 1e-05
    %v447 = vadd.f32 %v431, 1e-05
    %v448 = vadd.f32 %v432, 1e-05
    %v449 = vadd.f32 %v433, 1e-05
    %v450 = vadd.f32 %v434, 1e-05
    %v451 = vadd.f32 %v435, 1e-05
    %v452 = vadd.f32 %v436, 1e-05
    %v453 = vadd.f32 %v437, 1e-05
    %v454 = vadd.f32 %v438, 1e-05
    %v455 = vadd.f32 %v439, 1e-05
    %v456 = vadd.f32 %v440, 1e-05
    %v457 = vrsqrt.pop %v441
    %v458 = vrsqrt.pop %v442
    %v459 = vrsqrt.pop %v443
    %v460 = vrsqrt.pop %v444
    %v461 = vrsqrt.pop %v445
    %v462 = vrsqrt.pop %v446
    %v463 = vrsqrt.pop %v447
    %v464 = vrsqrt.pop %v448
    %v465 = vrsqrt.pop %v449
    %v466 = vrsqrt.pop %v450
    %v467 = vrsqrt.pop %v451
    %v468 = vrsqrt.pop %v452
    %v469 = vrsqrt.pop %v453
    %v470 = vrsqrt.pop %v454
    %v471 = vrsqrt.pop %v455
    %v472 = vrsqrt.pop %v456
    %v473 = vsub.f32 %v71, %v361
    %v474 = vsub.f32 %v72, %v362
    %v475 = vsub.f32 %v73, %v363
    %v476 = vsub.f32 %v74, %v364
    %v477 = vsub.f32 %v75, %v365
    %v478 = vsub.f32 %v76, %v366
    %v479 = vsub.f32 %v77, %v367
    %v480 = vsub.f32 %v78, %v368
    %v481 = vsub.f32 %v79, %v369
    %v482 = vsub.f32 %v80, %v370
    %v483 = vsub.f32 %v81, %v371
    %v484 = vsub.f32 %v82, %v372
    %v485 = vsub.f32 %v83, %v373
    %v486 = vsub.f32 %v84, %v374
    %v487 = vsub.f32 %v85, %v375
    %v488 = vsub.f32 %v86, %v376
    %v489 = vmul.f32 %v473, %v457
    %v490 = vmul.f32 %v474, %v458
    %v491 = vmul.f32 %v475, %v459
    %v492 = vmul.f32 %v476, %v460
    %v493 = vmul.f32 %v477, %v461
    %v494 = vmul.f32 %v478, %v462
    %v495 = vmul.f32 %v479, %v463
    %v496 = vmul.f32 %v480, %v464
    %v497 = vmul.f32 %v481, %v465
    %v498 = vmul.f32 %v482, %v466
    %v499 = vmul.f32 %v483, %v467
    %v500 = vmul.f32 %v484, %v468
    %v501 = vmul.f32 %v485, %v469
    %v502 = vmul.f32 %v486, %v470
    %v503 = vmul.f32 %v487, %v471
    %v504 = vmul.f32 %v488, %v472
    %v505 = vld [vmem:[#allocation5] sm:$0xff]
    %v506 = vld [vmem:[#allocation5 + $0x8] sm:$0xff]
    %v507 = vld [vmem:[#allocation5 + $0x10] sm:$0xff]
    %v508 = vld [vmem:[#allocation5 + $0x18] sm:$0xff]
    %v509 = vld [vmem:[#allocation5 + $0x20] sm:$0xff]
    %v510 = vld [vmem:[#allocation5 + $0x28] sm:$0xff]
    %v511 = vld [vmem:[#allocation5 + $0x30] sm:$0xff]
    %v512 = vld [vmem:[#allocation5 + $0x38] sm:$0xff]
    %v513 = vsub.f32 %v88, %v361
    %v514 = vsub.f32 %v89, %v362
    %v515 = vsub.f32 %v90, %v363
    %v516 = vsub.f32 %v91, %v364
    %v517 = vsub.f32 %v92, %v365
    %v518 = vsub.f32 %v93, %v366
    %v519 = vsub.f32 %v94, %v367
    %v520 = vsub.f32 %v95, %v368
    %v521 = vsub.f32 %v96, %v369
    %v522 = vsub.f32 %v97, %v370
    %v523 = vsub.f32 %v98, %v371
    %v524 = vsub.f32 %v99, %v372
    %v525 = vsub.f32 %v100, %v373
    %v526 = vsub.f32 %v101, %v374
    %v527 = vsub.f32 %v102, %v375
    %v528 = vsub.f32 %v103, %v376
    %v529 = vmul.f32 %v513, %v457
    %v530 = vmul.f32 %v514, %v458
    %v531 = vmul.f32 %v515, %v459
    %v532 = vmul.f32 %v516, %v460
    %v533 = vmul.f32 %v517, %v461
    %v534 = vmul.f32 %v518, %v462
    %v535 = vmul.f32 %v519, %v463
    %v536 = vmul.f32 %v520, %v464
    %v537 = vmul.f32 %v521, %v465
    %v538 = vmul.f32 %v522, %v466
    %v539 = vmul.f32 %v523, %v467
    %v540 = vmul.f32 %v524, %v468
    %v541 = vmul.f32 %v525, %v469
    %v542 = vmul.f32 %v526, %v470
    %v543 = vmul.f32 %v527, %v471
    %v544 = vmul.f32 %v528, %v472
    %v545 = vld [vmem:[#allocation7] sm:$0xff]
    %v546 = vld [vmem:[#allocation7 + $0x8] sm:$0xff]
    %v547 = vld [vmem:[#allocation7 + $0x10] sm:$0xff]
    %v548 = vld [vmem:[#allocation7 + $0x18] sm:$0xff]
    %v549 = vld [vmem:[#allocation7 + $0x20] sm:$0xff]
    %v550 = vld [vmem:[#allocation7 + $0x28] sm:$0xff]
    %v551 = vld [vmem:[#allocation7 + $0x30] sm:$0xff]
    %v552 = vld [vmem:[#allocation7 + $0x38] sm:$0xff]
    %v554 = vsel %vm104, %v529, 0
    %v557 = vsel %vm104, %v530, 0
    %v560 = vsel %vm104, %v531, 0
    %v563 = vsel %vm104, %v532, 0
    %v566 = vsel %vm104, %v533, 0
    %v569 = vsel %vm104, %v534, 0
    %v572 = vsel %vm104, %v535, 0
    %v575 = vsel %vm104, %v536, 0
    %v578 = vsel %vm104, %v537, 0
    %v581 = vsel %vm104, %v538, 0
    %v584 = vsel %vm104, %v539, 0
    %v587 = vsel %vm104, %v540, 0
    %v590 = vsel %vm104, %v541, 0
    %v593 = vsel %vm104, %v542, 0
    %v596 = vsel %vm104, %v543, 0
    %v599 = vsel %vm104, %v544, 0
    %601 = vmatprep.subr.mxu0 0.0
    %602 = vmatpush1.msra.mxu0 %v545
    %603 = vmatprep.subr.mxu0 0.0
    %604 = vmatpush1.msra.mxu0 %v546
    %605 = vmatprep.subr.mxu0 0.0
    %606 = vmatpush1.msra.mxu0 %v547
    %607 = vmatprep.subr.mxu0 0.0
    %608 = vmatpush1.msra.mxu0 %v548
    %609 = vmatprep.subr.mxu0 0.0
    %610 = vmatpush1.msra.mxu0 %v549
    %611 = vmatprep.subr.mxu0 0.0
    %612 = vmatpush1.msra.mxu0 %v550
    %613 = vmatprep.subr.mxu0 0.0
    %614 = vmatpush1.msra.mxu0 %v551
    %615 = vmatprep.subr.mxu0 0.0
    %616 = vmatpush1.msra.mxu0 %v552
    %617 = vmatprep.subr.mxu0 0.0
    %618 = vmatpush1.msra.mxu0 0.0
    %619 = vmatprep.subr.mxu0 0.0
    %620 = vmatpush1.msra.mxu0 0.0
    %621 = vmatprep.subr.mxu0 0.0
    %622 = vmatpush1.msra.mxu0 0.0
    %623 = vmatprep.subr.mxu0 0.0
    %624 = vmatpush1.msra.mxu0 0.0
    %625 = vmatprep.subr.mxu0 0.0
    %626 = vmatpush1.msra.mxu0 0.0
    %627 = vmatprep.subr.mxu0 0.0
    %628 = vmatpush1.msra.mxu0 0.0
    %629 = vmatprep.subr.mxu0 0.0
    %630 = vmatpush1.msra.mxu0 0.0
    %631 = vmatprep.subr.mxu0 0.0
    %632 = vmatpush1.msra.mxu0 0.0
    %633 = vmatprep.subr.mxu0 0.0
    %634 = vmatpush1.msra.mxu0 0.0
    %635 = vmatprep.subr.mxu0 0.0
    %636 = vmatpush1.msra.mxu0 0.0
    %637 = vmatprep.subr.mxu0 0.0
    %638 = vmatpush1.msra.mxu0 0.0
    %639 = vmatprep.subr.mxu0 0.0
    %640 = vmatpush1.msra.mxu0 0.0
    %641 = vmatprep.subr.mxu0 0.0
    %642 = vmatpush1.msra.mxu0 0.0
    %643 = vmatprep.subr.mxu0 0.0
    %644 = vmatpush1.msra.mxu0 0.0
    %645 = vmatprep.subr.mxu0 0.0
    %646 = vmatpush1.msra.mxu0 0.0
    %647 = vmatprep.subr.mxu0 0.0
    %648 = vmatpush1.msra.mxu0 0.0
    %649 = vmatprep.subr.mxu0 0.0
    %650 = vmatpush1.msra.mxu0 0.0
    %651 = vmatprep.subr.mxu0 0.0
    %652 = vmatpush1.msra.mxu0 0.0
    %653 = vmatprep.subr.mxu0 0.0
    %654 = vmatpush1.msra.mxu0 0.0
    %655 = vmatprep.subr.mxu0 0.0
    %656 = vmatpush1.msra.mxu0 0.0
    %657 = vmatprep.subr.mxu0 0.0
    %658 = vmatpush1.msra.mxu0 0.0
    %659 = vmatprep.subr.mxu0 0.0
    %660 = vmatpush1.msra.mxu0 0.0
    %661 = vmatprep.subr.mxu0 0.0
    %662 = vmatpush1.msra.mxu0 0.0
    %663 = vmatprep.subr.mxu0 0.0
    %664 = vmatpush1.msra.mxu0 0.0
    %665 = vmatprep.mubr.f32.mxu0 0.0
    %666 = vmatmul.mubr.f32.gmra.mrb[0].mxu0 %v554
    %v667 = vpop.f32.mrb[0].mxu0
    %v668 = vadd.f32 0.0, %v667
    %v669 = vpop.f32.mrb[0].mxu0
    %670 = vmatprep.mubr.f32.mxu0 0.0
    %671 = vmatmul.mubr.f32.gmra.mrb[0].mxu0 %v557
    %v672 = vpop.f32.mrb[0].mxu0
    %v673 = vadd.f32 0.0, %v672
    %v674 = vpop.f32.mrb[0].mxu0
    %675 = vmatprep.mubr.f32.mxu0 0.0
    %676 = vmatmul.mubr.f32.gmra.mrb[0].mxu0 %v560
    %v677 = vpop.f32.mrb[0].mxu0
    %v678 = vadd.f32 0.0, %v677
    %v679 = vpop.f32.mrb[0].mxu0
    %680 = vmatprep.mubr.f32.mxu0 0.0
    %681 = vmatmul.mubr.f32.gmra.mrb[0].mxu0 %v563
    %v682 = vpop.f32.mrb[0].mxu0
    %v683 = vadd.f32 0.0, %v682
    %v684 = vpop.f32.mrb[0].mxu0
    %685 = vmatprep.mubr.f32.mxu0 0.0
    %686 = vmatmul.mubr.f32.gmra.mrb[0].mxu0 %v566
    %v687 = vpop.f32.mrb[0].mxu0
    %v688 = vadd.f32 0.0, %v687
    %v689 = vpop.f32.mrb[0].mxu0
    %690 = vmatprep.mubr.f32.mxu0 0.0
    %691 = vmatmul.mubr.f32.gmra.mrb[0].mxu0 %v569
    %v692 = vpop.f32.mrb[0].mxu0
    %v693 = vadd.f32 0.0, %v692
    %v694 = vpop.f32.mrb[0].mxu0
    %695 = vmatprep.mubr.f32.mxu0 0.0
    %696 = vmatmul.mubr.f32.gmra.mrb[0].mxu0 %v572
    %v697 = vpop.f32.mrb[0].mxu0
    %v698 = vadd.f32 0.0, %v697
    %v699 = vpop.f32.mrb[0].mxu0
    %700 = vmatprep.mubr.f32.mxu0 0.0
    %701 = vmatmul.mubr.f32.gmra.mrb[0].mxu0 %v575
    %v702 = vpop.f32.mrb[0].mxu0
    %v703 = vadd.f32 0.0, %v702
    %v704 = vpop.f32.mrb[0].mxu0
    %705 = vmatprep.mubr.f32.mxu0 0.0
    %706 = vmatmul.mubr.f32.gmra.mrb[0].mxu0 %v578
    %v707 = vpop.f32.mrb[0].mxu0
    %v708 = vadd.f32 0.0, %v707
    %v709 = vpop.f32.mrb[0].mxu0
    %710 = vmatprep.mubr.f32.mxu0 0.0
    %711 = vmatmul.mubr.f32.gmra.mrb[0].mxu0 %v581
    %v712 = vpop.f32.mrb[0].mxu0
    %v713 = vadd.f32 0.0, %v712
    %v714 = vpop.f32.mrb[0].mxu0
    %715 = vmatprep.mubr.f32.mxu0 0.0
    %716 = vmatmul.mubr.f32.gmra.mrb[0].mxu0 %v584
    %v717 = vpop.f32.mrb[0].mxu0
    %v718 = vadd.f32 0.0, %v717
    %v719 = vpop.f32.mrb[0].mxu0
    %720 = vmatprep.mubr.f32.mxu0 0.0
    %721 = vmatmul.mubr.f32.gmra.mrb[0].mxu0 %v587
    %v722 = vpop.f32.mrb[0].mxu0
    %v723 = vadd.f32 0.0, %v722
    %v724 = vpop.f32.mrb[0].mxu0
    %725 = vmatprep.mubr.f32.mxu0 0.0
    %726 = vmatmul.mubr.f32.gmra.mrb[0].mxu0 %v590
    %v727 = vpop.f32.mrb[0].mxu0
    %v728 = vadd.f32 0.0, %v727
    %v729 = vpop.f32.mrb[0].mxu0
    %730 = vmatprep.mubr.f32.mxu0 0.0
    %731 = vmatmul.mubr.f32.gmra.mrb[0].mxu0 %v593
    %v732 = vpop.f32.mrb[0].mxu0
    %v733 = vadd.f32 0.0, %v732
    %v734 = vpop.f32.mrb[0].mxu0
    %735 = vmatprep.mubr.f32.mxu0 0.0
    %736 = vmatmul.mubr.f32.gmra.mrb[0].mxu0 %v596
    %v737 = vpop.f32.mrb[0].mxu0
    %v738 = vadd.f32 0.0, %v737
    %v739 = vpop.f32.mrb[0].mxu0
    %740 = vmatprep.mubr.f32.mxu0 0.0
    %741 = vmatmul.mubr.f32.gmra.mrb[0].mxu0 %v599
    %v742 = vpop.f32.mrb[0].mxu0
    %v743 = vadd.f32 0.0, %v742
    %v744 = vpop.f32.mrb[0].mxu0
    %745 = vdwg.mxu0
    %v747 = vsel %vm104, %v489, 0
    %v750 = vsel %vm104, %v490, 0
    %v753 = vsel %vm104, %v491, 0
    %v756 = vsel %vm104, %v492, 0
    %v759 = vsel %vm104, %v493, 0
    %v762 = vsel %vm104, %v494, 0
    %v765 = vsel %vm104, %v495, 0
    %v768 = vsel %vm104, %v496, 0
    %v771 = vsel %vm104, %v497, 0
    %v774 = vsel %vm104, %v498, 0
    %v777 = vsel %vm104, %v499, 0
    %v780 = vsel %vm104, %v500, 0
    %v783 = vsel %vm104, %v501, 0
    %v786 = vsel %vm104, %v502, 0
    %v789 = vsel %vm104, %v503, 0
    %v792 = vsel %vm104, %v504, 0
    %794 = vmatprep.subr.mxu0 0.0
    %795 = vmatpush1.msra.mxu0 %v505
    %796 = vmatprep.subr.mxu0 0.0
    %797 = vmatpush1.msra.mxu0 %v506
    %798 = vmatprep.subr.mxu0 0.0
    %799 = vmatpush1.msra.mxu0 %v507
    %800 = vmatprep.subr.mxu0 0.0
    %801 = vmatpush1.msra.mxu0 %v508
    %802 = vmatprep.subr.mxu0 0.0
    %803 = vmatpush1.msra.mxu0 %v509
    %804 = vmatprep.subr.mxu0 0.0
    %805 = vmatpush1.msra.mxu0 %v510
    %806 = vmatprep.subr.mxu0 0.0
    %807 = vmatpush1.msra.mxu0 %v511
    %808 = vmatprep.subr.mxu0 0.0
    %809 = vmatpush1.msra.mxu0 %v512
    %810 = vmatprep.subr.mxu0 0.0
    %811 = vmatpush1.msra.mxu0 0.0
    %812 = vmatprep.subr.mxu0 0.0
    %813 = vmatpush1.msra.mxu0 0.0
    %814 = vmatprep.subr.mxu0 0.0
    %815 = vmatpush1.msra.mxu0 0.0
    %816 = vmatprep.subr.mxu0 0.0
    %817 = vmatpush1.msra.mxu0 0.0
    %818 = vmatprep.subr.mxu0 0.0
    %819 = vmatpush1.msra.mxu0 0.0
    %820 = vmatprep.subr.mxu0 0.0
    %821 = vmatpush1.msra.mxu0 0.0
    %822 = vmatprep.subr.mxu0 0.0
    %823 = vmatpush1.msra.mxu0 0.0
    %824 = vmatprep.subr.mxu0 0.0
    %825 = vmatpush1.msra.mxu0 0.0
    %826 = vmatprep.subr.mxu0 0.0
    %827 = vmatpush1.msra.mxu0 0.0
    %828 = vmatprep.subr.mxu0 0.0
    %829 = vmatpush1.msra.mxu0 0.0
    %830 = vmatprep.subr.mxu0 0.0
    %831 = vmatpush1.msra.mxu0 0.0
    %832 = vmatprep.subr.mxu0 0.0
    %833 = vmatpush1.msra.mxu0 0.0
    %834 = vmatprep.subr.mxu0 0.0
    %835 = vmatpush1.msra.mxu0 0.0
    %836 = vmatprep.subr.mxu0 0.0
    %837 = vmatpush1.msra.mxu0 0.0
    %838 = vmatprep.subr.mxu0 0.0
    %839 = vmatpush1.msra.mxu0 0.0
    %840 = vmatprep.subr.mxu0 0.0
    %841 = vmatpush1.msra.mxu0 0.0
    %842 = vmatprep.subr.mxu0 0.0
    %843 = vmatpush1.msra.mxu0 0.0
    %844 = vmatprep.subr.mxu0 0.0
    %845 = vmatpush1.msra.mxu0 0.0
    %846 = vmatprep.subr.mxu0 0.0
    %847 = vmatpush1.msra.mxu0 0.0
    %848 = vmatprep.subr.mxu0 0.0
    %849 = vmatpush1.msra.mxu0 0.0
    %850 = vmatprep.subr.mxu0 0.0
    %851 = vmatpush1.msra.mxu0 0.0
    %852 = vmatprep.subr.mxu0 0.0
    %853 = vmatpush1.msra.mxu0 0.0
    %854 = vmatprep.subr.mxu0 0.0
    %855 = vmatpush1.msra.mxu0 0.0
    %856 = vmatprep.subr.mxu0 0.0
    %857 = vmatpush1.msra.mxu0 0.0
    %858 = vmatprep.mubr.f32.mxu0 0.0
    %859 = vmatmul.mubr.f32.gmra.mrb[0].mxu0 %v747
    %v860 = vpop.f32.mrb[0].mxu0
    %v861 = vadd.f32 %v668, %v860
    %v862 = vpop.f32.mrb[0].mxu0
    %863 = vmatprep.mubr.f32.mxu0 0.0
    %864 = vmatmul.mubr.f32.gmra.mrb[0].mxu0 %v750
    %v865 = vpop.f32.mrb[0].mxu0
    %v866 = vadd.f32 %v673, %v865
    %v867 = vpop.f32.mrb[0].mxu0
    %868 = vmatprep.mubr.f32.mxu0 0.0
    %869 = vmatmul.mubr.f32.gmra.mrb[0].mxu0 %v753
    %v870 = vpop.f32.mrb[0].mxu0
    %v871 = vadd.f32 %v678, %v870
    %v872 = vpop.f32.mrb[0].mxu0
    %873 = vmatprep.mubr.f32.mxu0 0.0
    %874 = vmatmul.mubr.f32.gmra.mrb[0].mxu0 %v756
    %v875 = vpop.f32.mrb[0].mxu0
    %v876 = vadd.f32 %v683, %v875
    %v877 = vpop.f32.mrb[0].mxu0
    %878 = vmatprep.mubr.f32.mxu0 0.0
    %879 = vmatmul.mubr.f32.gmra.mrb[0].mxu0 %v759
    %v880 = vpop.f32.mrb[0].mxu0
    %v881 = vadd.f32 %v688, %v880
    %v882 = vpop.f32.mrb[0].mxu0
    %883 = vmatprep.mubr.f32.mxu0 0.0
    %884 = vmatmul.mubr.f32.gmra.mrb[0].mxu0 %v762
    %v885 = vpop.f32.mrb[0].mxu0
    %v886 = vadd.f32 %v693, %v885
    %v887 = vpop.f32.mrb[0].mxu0
    %888 = vmatprep.mubr.f32.mxu0 0.0
    %889 = vmatmul.mubr.f32.gmra.mrb[0].mxu0 %v765
    %v890 = vpop.f32.mrb[0].mxu0
    %v891 = vadd.f32 %v698, %v890
    %v892 = vpop.f32.mrb[0].mxu0
    %893 = vmatprep.mubr.f32.mxu0 0.0
    %894 = vmatmul.mubr.f32.gmra.mrb[0].mxu0 %v768
    %v895 = vpop.f32.mrb[0].mxu0
    %v896 = vadd.f32 %v703, %v895
    %v897 = vpop.f32.mrb[0].mxu0
    %898 = vmatprep.mubr.f32.mxu0 0.0
    %899 = vmatmul.mubr.f32.gmra.mrb[0].mxu0 %v771
    %v900 = vpop.f32.mrb[0].mxu0
    %v901 = vadd.f32 %v708, %v900
    %v902 = vpop.f32.mrb[0].mxu0
    %903 = vmatprep.mubr.f32.mxu0 0.0
    %904 = vmatmul.mubr.f32.gmra.mrb[0].mxu0 %v774
    %v905 = vpop.f32.mrb[0].mxu0
    %v906 = vadd.f32 %v713, %v905
    %v907 = vpop.f32.mrb[0].mxu0
    %908 = vmatprep.mubr.f32.mxu0 0.0
    %909 = vmatmul.mubr.f32.gmra.mrb[0].mxu0 %v777
    %v910 = vpop.f32.mrb[0].mxu0
    %v911 = vadd.f32 %v718, %v910
    %v912 = vpop.f32.mrb[0].mxu0
    %913 = vmatprep.mubr.f32.mxu0 0.0
    %914 = vmatmul.mubr.f32.gmra.mrb[0].mxu0 %v780
    %v915 = vpop.f32.mrb[0].mxu0
    %v916 = vadd.f32 %v723, %v915
    %v917 = vpop.f32.mrb[0].mxu0
    %918 = vmatprep.mubr.f32.mxu0 0.0
    %919 = vmatmul.mubr.f32.gmra.mrb[0].mxu0 %v783
    %v920 = vpop.f32.mrb[0].mxu0
    %v921 = vadd.f32 %v728, %v920
    %v922 = vpop.f32.mrb[0].mxu0
    %923 = vmatprep.mubr.f32.mxu0 0.0
    %924 = vmatmul.mubr.f32.gmra.mrb[0].mxu0 %v786
    %v925 = vpop.f32.mrb[0].mxu0
    %v926 = vadd.f32 %v733, %v925
    %v927 = vpop.f32.mrb[0].mxu0
    %928 = vmatprep.mubr.f32.mxu0 0.0
    %929 = vmatmul.mubr.f32.gmra.mrb[0].mxu0 %v789
    %v930 = vpop.f32.mrb[0].mxu0
    %v931 = vadd.f32 %v738, %v930
    %v932 = vpop.f32.mrb[0].mxu0
    %933 = vmatprep.mubr.f32.mxu0 0.0
    %934 = vmatmul.mubr.f32.gmra.mrb[0].mxu0 %v792
    %v935 = vpop.f32.mrb[0].mxu0
    %v936 = vadd.f32 %v743, %v935
    %v937 = vpop.f32.mrb[0].mxu0
    %938 = vdwg.mxu0
    %v939 = vld [vmem:[#allocation8] sm:$0x1]
    %v941 = vlaneseq
    %v942 = vshrl.u32 %v941, 7
    %v943 = vsub.s32 0, %v942
    %v944 = vrot.slane %v939, %v943
    %v946 = vadd.f32 %v861, %v944
    %v947 = vadd.f32 %v866, %v944
    %v948 = vadd.f32 %v871, %v944
    %v949 = vadd.f32 %v876, %v944
    %v950 = vadd.f32 %v881, %v944
    %v951 = vadd.f32 %v886, %v944
    %v952 = vadd.f32 %v891, %v944
    %v953 = vadd.f32 %v896, %v944
    %v954 = vadd.f32 %v901, %v944
    %v955 = vadd.f32 %v906, %v944
    %v956 = vadd.f32 %v911, %v944
    %v957 = vadd.f32 %v916, %v944
    %v958 = vadd.f32 %v921, %v944
    %v959 = vadd.f32 %v926, %v944
    %v960 = vadd.f32 %v931, %v944
    %v961 = vadd.f32 %v936, %v944
    %962 = vst.msk [vmem:[#allocation10] sm:$0xff] %vm104, %v946
    %963 = vst.msk [vmem:[#allocation10 + $0x8] sm:$0xff] %vm104, %v947
    %964 = vst.msk [vmem:[#allocation10 + $0x10] sm:$0xff] %vm104, %v948
    %965 = vst.msk [vmem:[#allocation10 + $0x18] sm:$0xff] %vm104, %v949
    %966 = vst.msk [vmem:[#allocation10 + $0x20] sm:$0xff] %vm104, %v950
    %967 = vst.msk [vmem:[#allocation10 + $0x28] sm:$0xff] %vm104, %v951
    %968 = vst.msk [vmem:[#allocation10 + $0x30] sm:$0xff] %vm104, %v952
    %969 = vst.msk [vmem:[#allocation10 + $0x38] sm:$0xff] %vm104, %v953
    %970 = vst.msk [vmem:[#allocation10 + $0x40] sm:$0xff] %vm104, %v954
    %971 = vst.msk [vmem:[#allocation10 + $0x48] sm:$0xff] %vm104, %v955
    %972 = vst.msk [vmem:[#allocation10 + $0x50] sm:$0xff] %vm104, %v956
    %973 = vst.msk [vmem:[#allocation10 + $0x58] sm:$0xff] %vm104, %v957
    %974 = vst.msk [vmem:[#allocation10 + $0x60] sm:$0xff] %vm104, %v958
    %975 = vst.msk [vmem:[#allocation10 + $0x68] sm:$0xff] %vm104, %v959
    %976 = vst.msk [vmem:[#allocation10 + $0x70] sm:$0xff] %vm104, %v960
    %977 = vst.msk [vmem:[#allocation10 + $0x78] sm:$0xff] %vm104, %v961
    // Predicated region
    $region34: #{tpu_custom_call.1} parent=1 // pred_check
      _
    $region35: #{tpu_custom_call.1} parent=1 // pred_check_branch
      %979 = sbr.rel (0) target = $region37
    $region36: #{tpu_custom_call.1} parent=1 // pred_region
      %s981 = ssub.s32 2048, 2048
      %982 = vsyncadd [#allocation4], %s981
      %s983 = sshll.u32 [#allocation10], 4
      %s984 = int_to_ptr.vmem [resolvable:$true] %s983
      %989 = dma.vmem_to_hbm [thread:$0]  %s984, 2048, %s4, [#allocation4], 128, 128, 8
    $region37: #{tpu_custom_call.1} parent=1 // pred_fallthru
      _
    // Predicated region
    $region38: #{tpu_custom_call.1} parent=1 // pred_check
      _
    $region39: #{tpu_custom_call.1} parent=1 // pred_check_branch
      %991 = sbr.rel (0) target = $region41
    $region40: #{tpu_custom_call.1} parent=1 // pred_region
      %992 = dma.done [#allocation4], 2048
    $region41: #{tpu_custom_call.1} parent=1 // pred_fallthru
      _
    %993 = vsyncpa [#allocation3], 1
    %994 = vsyncpa [#allocation6], 1
    %995 = vsyncpa [#allocation9], 1
    %996 = vsyncpa [#allocation4], 1

// kernel: tpu_custom_call.1
$region0: #{tpu_custom_call.1}
  #allocation0 [shape = 'u32[]', space=smem, size = 0x4, offset = 0x4, fixed_abs, tag = 'smem constant byte address 0x4 - core index']
  #allocation1 [shape = 'u32[144,128]{1,0:T(1,128)}', space=vmem, size = 0x12000, scoped, tag = 'internal scratch']
  %s0 = inlined_call_operand.hbm [shape: f32[16,2,8,64], index: 0, kind: input, shape index: {}]
  %s1 = inlined_call_operand.hbm [shape: f32[64,64], index: 1, kind: input, shape index: {}]
  %s2 = inlined_call_operand.hbm [shape: f32[64,64], index: 2, kind: input, shape index: {}]
  %s3 = inlined_call_operand.hbm [shape: f32[1,64], index: 3, kind: input, shape index: {}]
  %s4 = inlined_call_operand.hbm [shape: f32[128,64], index: 4, kind: output, shape index: {}]
  %s5 = sld [smem:[#allocation0]]
  $region42: #{tpu_custom_call.1} parent=0
    _
  %s7 = ssub.s32 1, %s5
  %s8 = scalar_select 0, %s7, %s5
  $region1: #{tpu_custom_call.1} parent=0
    #allocation2 [shape = 'u8[131072]{0}', space=vmem, size = 0x20000, scoped, tag = 'input window, operand 0, single buffered']
    #allocation3 [shape = 's32[1]{0}', space=sflag, size = 0x4, scoped, tag = 'scoped memory for tpu_custom_call.1']
    #allocation4 [shape = 's32[1]{0}', space=sflag, size = 0x4, scoped, tag = 'scoped memory for tpu_custom_call.1']
    #allocation5 [shape = 'u8[32768]{0}', space=vmem, size = 0x8000, scoped, tag = 'input window, operand 1, single buffered']
    #allocation6 [shape = 's32[1]{0}', space=sflag, size = 0x4, scoped, tag = 'scoped memory for tpu_custom_call.1']
    #allocation7 [shape = 'u8[32768]{0}', space=vmem, size = 0x8000, scoped, tag = 'input window, operand 2, single buffered']
    #allocation8 [shape = 'u8[512]{0}', space=vmem, size = 0x400, scoped, tag = 'input window, operand 3, single buffered']
    #allocation9 [shape = 's32[1]{0}', space=sflag, size = 0x4, scoped, tag = 'scoped memory for tpu_custom_call.1']
    #allocation10 [shape = 'u8[65536]{0}', space=vmem, size = 0x10000, scoped, tag = 'output window, operand 0, single buffered']
    %9 = vsyncpa [#allocation3], 0
    %10 = vsyncpa [#allocation6], 0
    %11 = vsyncpa [#allocation9], 0
    %12 = vsyncpa [#allocation4], 0
    // Predicated region
    $region2: #{tpu_custom_call.1} parent=1 // pred_check
      _
    $region3: #{tpu_custom_call.1} parent=1 // pred_check_branch
      %14 = sbr.rel (0) target = $region5
    $region4: #{tpu_custom_call.1} parent=1 // pred_region
      %s16 = ssub.s32 4096, 4096
      %17 = vsyncadd [#allocation3], %s16
      %s18 = sshll.u32 [#allocation2], 4
      %s19 = int_to_ptr.vmem [resolvable:$true] %s18
      %24 = dma.hbm_to_vmem [thread:$0]  %s0, 4096, %s19, [#allocation3], 128, 128, 8
    $region5: #{tpu_custom_call.1} parent=1 // pred_fallthru
      _
    // Predicated region
    $region6: #{tpu_custom_call.1} parent=1 // pred_check
      _
    $region7: #{tpu_custom_call.1} parent=1 // pred_check_branch
      %26 = sbr.rel (0) target = $region9
    $region8: #{tpu_custom_call.1} parent=1 // pred_region
      %s28 = ssub.s32 1024, 1024
      %29 = vsyncadd [#allocation6], %s28
      %s30 = sshll.u32 [#allocation5], 4
      %s31 = int_to_ptr.vmem [resolvable:$true] %s30
      %36 = dma.hbm_to_vmem [thread:$0]  %s1, 1024, %s31, [#allocation6], 128, 128, 8
    $region9: #{tpu_custom_call.1} parent=1 // pred_fallthru
      _
    // Predicated region
    $region10: #{tpu_custom_call.1} parent=1 // pred_check
      _
    $region11: #{tpu_custom_call.1} parent=1 // pred_check_branch
      %38 = sbr.rel (0) target = $region13
    $region12: #{tpu_custom_call.1} parent=1 // pred_region
      %s40 = ssub.s32 1024, 1024
      %41 = vsyncadd [#allocation6], %s40
      %s42 = sshll.u32 [#allocation7], 4
      %s43 = int_to_ptr.vmem [resolvable:$true] %s42
      %48 = dma.hbm_to_vmem [thread:$0]  %s2, 1024, %s43, [#allocation6], 128, 128, 8
    $region13: #{tpu_custom_call.1} parent=1 // pred_fallthru
      _
    // Predicated region
    $region14: #{tpu_custom_call.1} parent=1 // pred_check
      _
    $region15: #{tpu_custom_call.1} parent=1 // pred_check_branch
      %50 = sbr.rel (0) target = $region17
    $region16: #{tpu_custom_call.1} parent=1 // pred_region
      %s52 = ssub.s32 16, 16
      %53 = vsyncadd [#allocation9], %s52
      %s55 = sshll.u32 [#allocation8], 4
      %s56 = int_to_ptr.vmem [resolvable:$true] %s55
      %58 = dma.hbm_to_vmem [thread:$0]  %s3, 16, %s56, [#allocation9]
    $region17: #{tpu_custom_call.1} parent=1 // pred_fallthru
      _
    // Predicated region
    $region18: #{tpu_custom_call.1} parent=1 // pred_check
      _
    $region19: #{tpu_custom_call.1} parent=1 // pred_check_branch
      %60 = sbr.rel (0) target = $region21
    $region20: #{tpu_custom_call.1} parent=1 // pred_region
      %61 = dma.done [#allocation3], 4096
    $region21: #{tpu_custom_call.1} parent=1 // pred_fallthru
      _
    // Predicated region
    $region22: #{tpu_custom_call.1} parent=1 // pred_check
      _
    $region23: #{tpu_custom_call.1} parent=1 // pred_check_branch
      %63 = sbr.rel (0) target = $region25
    $region24: #{tpu_custom_call.1} parent=1 // pred_region
      %64 = dma.done [#allocation6], 1024
    $region25: #{tpu_custom_call.1} parent=1 // pred_fallthru
      _
    // Predicated region
    $region26: #{tpu_custom_call.1} parent=1 // pred_check
      _
    $region27: #{tpu_custom_call.1} parent=1 // pred_check_branch
      %66 = sbr.rel (0) target = $region29
    $region28: #{tpu_custom_call.1} parent=1 // pred_region
      %67 = dma.done [#allocation6], 1024
    $region29: #{tpu_custom_call.1} parent=1 // pred_fallthru
      _
    // Predicated region
    $region30: #{tpu_custom_call.1} parent=1 // pred_check
      _
    $region31: #{tpu_custom_call.1} parent=1 // pred_check_branch
      %69 = sbr.rel (0) target = $region33
    $region32: #{tpu_custom_call.1} parent=1 // pred_region
      %70 = dma.done [#allocation9], 16
    $region33: #{tpu_custom_call.1} parent=1 // pred_fallthru
      _
    %v71 = vld [vmem:[#allocation2] sm:$0xff]
    %v72 = vld [vmem:[#allocation2 + $0x10] sm:$0xff]
    %v73 = vld [vmem:[#allocation2 + $0x20] sm:$0xff]
    %v74 = vld [vmem:[#allocation2 + $0x30] sm:$0xff]
    %v75 = vld [vmem:[#allocation2 + $0x40] sm:$0xff]
    %v76 = vld [vmem:[#allocation2 + $0x50] sm:$0xff]
    %v77 = vld [vmem:[#allocation2 + $0x60] sm:$0xff]
    %v78 = vld [vmem:[#allocation2 + $0x70] sm:$0xff]
    %v79 = vld [vmem:[#allocation2 + $0x80] sm:$0xff]
    %v80 = vld [vmem:[#allocation2 + $0x90] sm:$0xff]
    %v81 = vld [vmem:[#allocation2 + $0xa0] sm:$0xff]
    %v82 = vld [vmem:[#allocation2 + $0xb0] sm:$0xff]
    %v83 = vld [vmem:[#allocation2 + $0xc0] sm:$0xff]
    %v84 = vld [vmem:[#allocation2 + $0xd0] sm:$0xff]
    %v85 = vld [vmem:[#allocation2 + $0xe0] sm:$0xff]
    %v86 = vld [vmem:[#allocation2 + $0xf0] sm:$0xff]
    %s87 = scalar_lea.vmem [#allocation2], 8
    %v88 = vld [vmem:[%s87] sm:$0xff]
    %v89 = vld [vmem:[%s87 + $0x10] sm:$0xff]
    %v90 = vld [vmem:[%s87 + $0x20] sm:$0xff]
    %v91 = vld [vmem:[%s87 + $0x30] sm:$0xff]
    %v92 = vld [vmem:[%s87 + $0x40] sm:$0xff]
    %v93 = vld [vmem:[%s87 + $0x50] sm:$0xff]
    %v94 = vld [vmem:[%s87 + $0x60] sm:$0xff]
    %v95 = vld [vmem:[%s87 + $0x70] sm:$0xff]
    %v96 = vld [vmem:[%s87 + $0x80] sm:$0xff]
    %v97 = vld [vmem:[%s87 + $0x90] sm:$0xff]
    %v98 = vld [vmem:[%s87 + $0xa0] sm:$0xff]
    %v99 = vld [vmem:[%s87 + $0xb0] sm:$0xff]
    %v100 = vld [vmem:[%s87 + $0xc0] sm:$0xff]
    %v101 = vld [vmem:[%s87 + $0xd0] sm:$0xff]
    %v102 = vld [vmem:[%s87 + $0xe0] sm:$0xff]
    %v103 = vld [vmem:[%s87 + $0xf0] sm:$0xff]
    %vm104 = vcmask 523264
    %v105 = vsel %vm104, %v71, 0.0
    %106 = vadd.xlane.f32.xlu0 %v105
    %v107 = vpop.xlane.xlu0 %106
    %v108 = vsel %vm104, %v72, 0.0
    %109 = vadd.xlane.f32.xlu0 %v108
    %v110 = vpop.xlane.xlu0 %109
    %v111 = vsel %vm104, %v73, 0.0
    %112 = vadd.xlane.f32.xlu0 %v111
    %v113 = vpop.xlane.xlu0 %112
    %v114 = vsel %vm104, %v74, 0.0
    %115 = vadd.xlane.f32.xlu0 %v114
    %v116 = vpop.xlane.xlu0 %115
    %v117 = vsel %vm104, %v75, 0.0
    %118 = vadd.xlane.f32.xlu0 %v117
    %v119 = vpop.xlane.xlu0 %118
    %v120 = vsel %vm104, %v76, 0.0
    %121 = vadd.xlane.f32.xlu0 %v120
    %v122 = vpop.xlane.xlu0 %121
    %v123 = vsel %vm104, %v77, 0.0
    %124 = vadd.xlane.f32.xlu0 %v123
    %v125 = vpop.xlane.xlu0 %124
    %v126 = vsel %vm104, %v78, 0.0
    %127 = vadd.xlane.f32.xlu0 %v126
    %v128 = vpop.xlane.xlu0 %127
    %v129 = vsel %vm104, %v79, 0.0
    %130 = vadd.xlane.f32.xlu0 %v129
    %v131 = vpop.xlane.xlu0 %130
    %v132 = vsel %vm104, %v80, 0.0
    %133 = vadd.xlane.f32.xlu0 %v132
    %v134 = vpop.xlane.xlu0 %133
    %v135 = vsel %vm104, %v81, 0.0
    %136 = vadd.xlane.f32.xlu0 %v135
    %v137 = vpop.xlane.xlu0 %136
    %v138 = vsel %vm104, %v82, 0.0
    %139 = vadd.xlane.f32.xlu0 %v138
    %v140 = vpop.xlane.xlu0 %139
    %v141 = vsel %vm104, %v83, 0.0
    %142 = vadd.xlane.f32.xlu0 %v141
    %v143 = vpop.xlane.xlu0 %142
    %v144 = vsel %vm104, %v84, 0.0
    %145 = vadd.xlane.f32.xlu0 %v144
    %v146 = vpop.xlane.xlu0 %145
    %v147 = vsel %vm104, %v85, 0.0
    %148 = vadd.xlane.f32.xlu0 %v147
    %v149 = vpop.xlane.xlu0 %148
    %v150 = vsel %vm104, %v86, 0.0
    %151 = vadd.xlane.f32.xlu0 %v150
    %v152 = vpop.xlane.xlu0 %151
    %v153 = vsel %vm104, %v88, 0.0
    %154 = vadd.xlane.f32.xlu0 %v153
    %v155 = vpop.xlane.xlu0 %154
    %v156 = vsel %vm104, %v89, 0.0
    %157 = vadd.xlane.f32.xlu0 %v156
    %v158 = vpop.xlane.xlu0 %157
    %v159 = vsel %vm104, %v90, 0.0
    %160 = vadd.xlane.f32.xlu0 %v159
    %v161 = vpop.xlane.xlu0 %160
    %v162 = vsel %vm104, %v91, 0.0
    %163 = vadd.xlane.f32.xlu0 %v162
    %v164 = vpop.xlane.xlu0 %163
    %v165 = vsel %vm104, %v92, 0.0
    %166 = vadd.xlane.f32.xlu0 %v165
    %v167 = vpop.xlane.xlu0 %166
    %v168 = vsel %vm104, %v93, 0.0
    %169 = vadd.xlane.f32.xlu0 %v168
    %v170 = vpop.xlane.xlu0 %169
    %v171 = vsel %vm104, %v94, 0.0
    %172 = vadd.xlane.f32.xlu0 %v171
    %v173 = vpop.xlane.xlu0 %172
    %v174 = vsel %vm104, %v95, 0.0
    %175 = vadd.xlane.f32.xlu0 %v174
    %v176 = vpop.xlane.xlu0 %175
    %v177 = vsel %vm104, %v96, 0.0
    %178 = vadd.xlane.f32.xlu0 %v177
    %v179 = vpop.xlane.xlu0 %178
    %v180 = vsel %vm104, %v97, 0.0
    %181 = vadd.xlane.f32.xlu0 %v180
    %v182 = vpop.xlane.xlu0 %181
    %v183 = vsel %vm104, %v98, 0.0
    %184 = vadd.xlane.f32.xlu0 %v183
    %v185 = vpop.xlane.xlu0 %184
    %v186 = vsel %vm104, %v99, 0.0
    %187 = vadd.xlane.f32.xlu0 %v186
    %v188 = vpop.xlane.xlu0 %187
    %v189 = vsel %vm104, %v100, 0.0
    %190 = vadd.xlane.f32.xlu0 %v189
    %v191 = vpop.xlane.xlu0 %190
    %v192 = vsel %vm104, %v101, 0.0
    %193 = vadd.xlane.f32.xlu0 %v192
    %v194 = vpop.xlane.xlu0 %193
    %v195 = vsel %vm104, %v102, 0.0
    %196 = vadd.xlane.f32.xlu0 %v195
    %v197 = vpop.xlane.xlu0 %196
    %v198 = vsel %vm104, %v103, 0.0
    %199 = vadd.xlane.f32.xlu0 %v198
    %v200 = vpop.xlane.xlu0 %199
    %v201 = vadd.f32 %v107, %v155
    %v202 = vadd.f32 %v110, %v158
    %v203 = vadd.f32 %v113, %v161
    %v204 = vadd.f32 %v116, %v164
    %v205 = vadd.f32 %v119, %v167
    %v206 = vadd.f32 %v122, %v170
    %v207 = vadd.f32 %v125, %v173
    %v208 = vadd.f32 %v128, %v176
    %v209 = vadd.f32 %v131, %v179
    %v210 = vadd.f32 %v134, %v182
    %v211 = vadd.f32 %v137, %v185
    %v212 = vadd.f32 %v140, %v188
    %v213 = vadd.f32 %v143, %v191
    %v214 = vadd.f32 %v146, %v194
    %v215 = vadd.f32 %v149, %v197
    %v216 = vadd.f32 %v152, %v200
    %v217 = vmul.f32 %v71, %v71
    %v218 = vmul.f32 %v72, %v72
    %v219 = vmul.f32 %v73, %v73
    %v220 = vmul.f32 %v74, %v74
    %v221 = vmul.f32 %v75, %v75
    %v222 = vmul.f32 %v76, %v76
    %v223 = vmul.f32 %v77, %v77
    %v224 = vmul.f32 %v78, %v78
    %v225 = vmul.f32 %v79, %v79
    %v226 = vmul.f32 %v80, %v80
    %v227 = vmul.f32 %v81, %v81
    %v228 = vmul.f32 %v82, %v82
    %v229 = vmul.f32 %v83, %v83
    %v230 = vmul.f32 %v84, %v84
    %v231 = vmul.f32 %v85, %v85
    %v232 = vmul.f32 %v86, %v86
    %v233 = vsel %vm104, %v217, 0.0
    %234 = vadd.xlane.f32.xlu0 %v233
    %v235 = vpop.xlane.xlu0 %234
    %v236 = vsel %vm104, %v218, 0.0
    %237 = vadd.xlane.f32.xlu0 %v236
    %v238 = vpop.xlane.xlu0 %237
    %v239 = vsel %vm104, %v219, 0.0
    %240 = vadd.xlane.f32.xlu0 %v239
    %v241 = vpop.xlane.xlu0 %240
    %v242 = vsel %vm104, %v220, 0.0
    %243 = vadd.xlane.f32.xlu0 %v242
    %v244 = vpop.xlane.xlu0 %243
    %v245 = vsel %vm104, %v221, 0.0
    %246 = vadd.xlane.f32.xlu0 %v245
    %v247 = vpop.xlane.xlu0 %246
    %v248 = vsel %vm104, %v222, 0.0
    %249 = vadd.xlane.f32.xlu0 %v248
    %v250 = vpop.xlane.xlu0 %249
    %v251 = vsel %vm104, %v223, 0.0
    %252 = vadd.xlane.f32.xlu0 %v251
    %v253 = vpop.xlane.xlu0 %252
    %v254 = vsel %vm104, %v224, 0.0
    %255 = vadd.xlane.f32.xlu0 %v254
    %v256 = vpop.xlane.xlu0 %255
    %v257 = vsel %vm104, %v225, 0.0
    %258 = vadd.xlane.f32.xlu0 %v257
    %v259 = vpop.xlane.xlu0 %258
    %v260 = vsel %vm104, %v226, 0.0
    %261 = vadd.xlane.f32.xlu0 %v260
    %v262 = vpop.xlane.xlu0 %261
    %v263 = vsel %vm104, %v227, 0.0
    %264 = vadd.xlane.f32.xlu0 %v263
    %v265 = vpop.xlane.xlu0 %264
    %v266 = vsel %vm104, %v228, 0.0
    %267 = vadd.xlane.f32.xlu0 %v266
    %v268 = vpop.xlane.xlu0 %267
    %v269 = vsel %vm104, %v229, 0.0
    %270 = vadd.xlane.f32.xlu0 %v269
    %v271 = vpop.xlane.xlu0 %270
    %v272 = vsel %vm104, %v230, 0.0
    %273 = vadd.xlane.f32.xlu0 %v272
    %v274 = vpop.xlane.xlu0 %273
    %v275 = vsel %vm104, %v231, 0.0
    %276 = vadd.xlane.f32.xlu0 %v275
    %v277 = vpop.xlane.xlu0 %276
    %v278 = vsel %vm104, %v232, 0.0
    %279 = vadd.xlane.f32.xlu0 %v278
    %v280 = vpop.xlane.xlu0 %279
    %v281 = vmul.f32 %v88, %v88
    %v282 = vmul.f32 %v89, %v89
    %v283 = vmul.f32 %v90, %v90
    %v284 = vmul.f32 %v91, %v91
    %v285 = vmul.f32 %v92, %v92
    %v286 = vmul.f32 %v93, %v93
    %v287 = vmul.f32 %v94, %v94
    %v288 = vmul.f32 %v95, %v95
    %v289 = vmul.f32 %v96, %v96
    %v290 = vmul.f32 %v97, %v97
    %v291 = vmul.f32 %v98, %v98
    %v292 = vmul.f32 %v99, %v99
    %v293 = vmul.f32 %v100, %v100
    %v294 = vmul.f32 %v101, %v101
    %v295 = vmul.f32 %v102, %v102
    %v296 = vmul.f32 %v103, %v103
    %v297 = vsel %vm104, %v281, 0.0
    %298 = vadd.xlane.f32.xlu0 %v297
    %v299 = vpop.xlane.xlu0 %298
    %v300 = vsel %vm104, %v282, 0.0
    %301 = vadd.xlane.f32.xlu0 %v300
    %v302 = vpop.xlane.xlu0 %301
    %v303 = vsel %vm104, %v283, 0.0
    %304 = vadd.xlane.f32.xlu0 %v303
    %v305 = vpop.xlane.xlu0 %304
    %v306 = vsel %vm104, %v284, 0.0
    %307 = vadd.xlane.f32.xlu0 %v306
    %v308 = vpop.xlane.xlu0 %307
    %v309 = vsel %vm104, %v285, 0.0
    %310 = vadd.xlane.f32.xlu0 %v309
    %v311 = vpop.xlane.xlu0 %310
    %v312 = vsel %vm104, %v286, 0.0
    %313 = vadd.xlane.f32.xlu0 %v312
    %v314 = vpop.xlane.xlu0 %313
    %v315 = vsel %vm104, %v287, 0.0
    %316 = vadd.xlane.f32.xlu0 %v315
    %v317 = vpop.xlane.xlu0 %316
    %v318 = vsel %vm104, %v288, 0.0
    %319 = vadd.xlane.f32.xlu0 %v318
    %v320 = vpop.xlane.xlu0 %319
    %v321 = vsel %vm104, %v289, 0.0
    %322 = vadd.xlane.f32.xlu0 %v321
    %v323 = vpop.xlane.xlu0 %322
    %v324 = vsel %vm104, %v290, 0.0
    %325 = vadd.xlane.f32.xlu0 %v324
    %v326 = vpop.xlane.xlu0 %325
    %v327 = vsel %vm104, %v291, 0.0
    %328 = vadd.xlane.f32.xlu0 %v327
    %v329 = vpop.xlane.xlu0 %328
    %v330 = vsel %vm104, %v292, 0.0
    %331 = vadd.xlane.f32.xlu0 %v330
    %v332 = vpop.xlane.xlu0 %331
    %v333 = vsel %vm104, %v293, 0.0
    %334 = vadd.xlane.f32.xlu0 %v333
    %v335 = vpop.xlane.xlu0 %334
    %v336 = vsel %vm104, %v294, 0.0
    %337 = vadd.xlane.f32.xlu0 %v336
    %v338 = vpop.xlane.xlu0 %337
    %v339 = vsel %vm104, %v295, 0.0
    %340 = vadd.xlane.f32.xlu0 %v339
    %v341 = vpop.xlane.xlu0 %340
    %v342 = vsel %vm104, %v296, 0.0
    %343 = vadd.xlane.f32.xlu0 %v342
    %v344 = vpop.xlane.xlu0 %343
    %v345 = vadd.f32 %v235, %v299
    %v346 = vadd.f32 %v238, %v302
    %v347 = vadd.f32 %v241, %v305
    %v348 = vadd.f32 %v244, %v308
    %v349 = vadd.f32 %v247, %v311
    %v350 = vadd.f32 %v250, %v314
    %v351 = vadd.f32 %v253, %v317
    %v352 = vadd.f32 %v256, %v320
    %v353 = vadd.f32 %v259, %v323
    %v354 = vadd.f32 %v262, %v326
    %v355 = vadd.f32 %v265, %v329
    %v356 = vadd.f32 %v268, %v332
    %v357 = vadd.f32 %v271, %v335
    %v358 = vadd.f32 %v274, %v338
    %v359 = vadd.f32 %v277, %v341
    %v360 = vadd.f32 %v280, %v344
    %v361 = vmul.f32 %v201, 0.0078125
    %v362 = vmul.f32 %v202, 0.0078125
    %v363 = vmul.f32 %v203, 0.0078125
    %v364 = vmul.f32 %v204, 0.0078125
    %v365 = vmul.f32 %v205, 0.0078125
    %v366 = vmul.f32 %v206, 0.0078125
    %v367 = vmul.f32 %v207, 0.0078125
    %v368 = vmul.f32 %v208, 0.0078125
    %v369 = vmul.f32 %v209, 0.0078125
    %v370 = vmul.f32 %v210, 0.0078125
    %v371 = vmul.f32 %v211, 0.0078125
    %v372 = vmul.f32 %v212, 0.0078125
    %v373 = vmul.f32 %v213, 0.0078125
    %v374 = vmul.f32 %v214, 0.0078125
    %v375 = vmul.f32 %v215, 0.0078125
    %v376 = vmul.f32 %v216, 0.0078125
    %v377 = vmul.f32 %v345, 0.0078125
    %v378 = vmul.f32 %v346, 0.0078125
    %v379 = vmul.f32 %v347, 0.0078125
    %v380 = vmul.f32 %v348, 0.0078125
    %v381 = vmul.f32 %v349, 0.0078125
    %v382 = vmul.f32 %v350, 0.0078125
    %v383 = vmul.f32 %v351, 0.0078125
    %v384 = vmul.f32 %v352, 0.0078125
    %v385 = vmul.f32 %v353, 0.0078125
    %v386 = vmul.f32 %v354, 0.0078125
    %v387 = vmul.f32 %v355, 0.0078125
    %v388 = vmul.f32 %v356, 0.0078125
    %v389 = vmul.f32 %v357, 0.0078125
    %v390 = vmul.f32 %v358, 0.0078125
    %v391 = vmul.f32 %v359, 0.0078125
    %v392 = vmul.f32 %v360, 0.0078125
    %v393 = vmul.f32 %v361, %v361
    %v394 = vmul.f32 %v362, %v362
    %v395 = vmul.f32 %v363, %v363
    %v396 = vmul.f32 %v364, %v364
    %v397 = vmul.f32 %v365, %v365
    %v398 = vmul.f32 %v366, %v366
    %v399 = vmul.f32 %v367, %v367
    %v400 = vmul.f32 %v368, %v368
    %v401 = vmul.f32 %v369, %v369
    %v402 = vmul.f32 %v370, %v370
    %v403 = vmul.f32 %v371, %v371
    %v404 = vmul.f32 %v372, %v372
    %v405 = vmul.f32 %v373, %v373
    %v406 = vmul.f32 %v374, %v374
    %v407 = vmul.f32 %v375, %v375
    %v408 = vmul.f32 %v376, %v376
    %v409 = vsub.f32 %v377, %v393
    %v410 = vsub.f32 %v378, %v394
    %v411 = vsub.f32 %v379, %v395
    %v412 = vsub.f32 %v380, %v396
    %v413 = vsub.f32 %v381, %v397
    %v414 = vsub.f32 %v382, %v398
    %v415 = vsub.f32 %v383, %v399
    %v416 = vsub.f32 %v384, %v400
    %v417 = vsub.f32 %v385, %v401
    %v418 = vsub.f32 %v386, %v402
    %v419 = vsub.f32 %v387, %v403
    %v420 = vsub.f32 %v388, %v404
    %v421 = vsub.f32 %v389, %v405
    %v422 = vsub.f32 %v390, %v406
    %v423 = vsub.f32 %v391, %v407
    %v424 = vsub.f32 %v392, %v408
    %v425 = vmax.f32 %v409, 0.0
    %v426 = vmax.f32 %v410, 0.0
    %v427 = vmax.f32 %v411, 0.0
    %v428 = vmax.f32 %v412, 0.0
    %v429 = vmax.f32 %v413, 0.0
    %v430 = vmax.f32 %v414, 0.0
    %v431 = vmax.f32 %v415, 0.0
    %v432 = vmax.f32 %v416, 0.0
    %v433 = vmax.f32 %v417, 0.0
    %v434 = vmax.f32 %v418, 0.0
    %v435 = vmax.f32 %v419, 0.0
    %v436 = vmax.f32 %v420, 0.0
    %v437 = vmax.f32 %v421, 0.0
    %v438 = vmax.f32 %v422, 0.0
    %v439 = vmax.f32 %v423, 0.0
    %v440 = vmax.f32 %v424, 0.0
    %v441 = vadd.f32 %v425, 1e-05
    %v442 = vadd.f32 %v426, 1e-05
    %v443 = vadd.f32 %v427, 1e-05
    %v444 = vadd.f32 %v428, 1e-05
    %v445 = vadd.f32 %v429, 1e-05
    %v446 = vadd.f32 %v430, 1e-05
    %v447 = vadd.f32 %v431, 1e-05
    %v448 = vadd.f32 %v432, 1e-05
    %v449 = vadd.f32 %v433, 1e-05
    %v450 = vadd.f32 %v434, 1e-05
    %v451 = vadd.f32 %v435, 1e-05
    %v452 = vadd.f32 %v436, 1e-05
    %v453 = vadd.f32 %v437, 1e-05
    %v454 = vadd.f32 %v438, 1e-05
    %v455 = vadd.f32 %v439, 1e-05
    %v456 = vadd.f32 %v440, 1e-05
    %v457 = vrsqrt.pop %v441
    %v458 = vrsqrt.pop %v442
    %v459 = vrsqrt.pop %v443
    %v460 = vrsqrt.pop %v444
    %v461 = vrsqrt.pop %v445
    %v462 = vrsqrt.pop %v446
    %v463 = vrsqrt.pop %v447
    %v464 = vrsqrt.pop %v448
    %v465 = vrsqrt.pop %v449
    %v466 = vrsqrt.pop %v450
    %v467 = vrsqrt.pop %v451
    %v468 = vrsqrt.pop %v452
    %v469 = vrsqrt.pop %v453
    %v470 = vrsqrt.pop %v454
    %v471 = vrsqrt.pop %v455
    %v472 = vrsqrt.pop %v456
    %v473 = vsub.f32 %v71, %v361
    %v474 = vsub.f32 %v72, %v362
    %v475 = vsub.f32 %v73, %v363
    %v476 = vsub.f32 %v74, %v364
    %v477 = vsub.f32 %v75, %v365
    %v478 = vsub.f32 %v76, %v366
    %v479 = vsub.f32 %v77, %v367
    %v480 = vsub.f32 %v78, %v368
    %v481 = vsub.f32 %v79, %v369
    %v482 = vsub.f32 %v80, %v370
    %v483 = vsub.f32 %v81, %v371
    %v484 = vsub.f32 %v82, %v372
    %v485 = vsub.f32 %v83, %v373
    %v486 = vsub.f32 %v84, %v374
    %v487 = vsub.f32 %v85, %v375
    %v488 = vsub.f32 %v86, %v376
    %v489 = vmul.f32 %v473, %v457
    %v490 = vmul.f32 %v474, %v458
    %v491 = vmul.f32 %v475, %v459
    %v492 = vmul.f32 %v476, %v460
    %v493 = vmul.f32 %v477, %v461
    %v494 = vmul.f32 %v478, %v462
    %v495 = vmul.f32 %v479, %v463
    %v496 = vmul.f32 %v480, %v464
    %v497 = vmul.f32 %v481, %v465
    %v498 = vmul.f32 %v482, %v466
    %v499 = vmul.f32 %v483, %v467
    %v500 = vmul.f32 %v484, %v468
    %v501 = vmul.f32 %v485, %v469
    %v502 = vmul.f32 %v486, %v470
    %v503 = vmul.f32 %v487, %v471
    %v504 = vmul.f32 %v488, %v472
    %v505 = vld [vmem:[#allocation5] sm:$0xff]
    %v506 = vld [vmem:[#allocation5 + $0x8] sm:$0xff]
    %v507 = vld [vmem:[#allocation5 + $0x10] sm:$0xff]
    %v508 = vld [vmem:[#allocation5 + $0x18] sm:$0xff]
    %v509 = vld [vmem:[#allocation5 + $0x20] sm:$0xff]
    %v510 = vld [vmem:[#allocation5 + $0x28] sm:$0xff]
    %v511 = vld [vmem:[#allocation5 + $0x30] sm:$0xff]
    %v512 = vld [vmem:[#allocation5 + $0x38] sm:$0xff]
    %v513 = vsub.f32 %v88, %v361
    %v514 = vsub.f32 %v89, %v362
    %v515 = vsub.f32 %v90, %v363
    %v516 = vsub.f32 %v91, %v364
    %v517 = vsub.f32 %v92, %v365
    %v518 = vsub.f32 %v93, %v366
    %v519 = vsub.f32 %v94, %v367
    %v520 = vsub.f32 %v95, %v368
    %v521 = vsub.f32 %v96, %v369
    %v522 = vsub.f32 %v97, %v370
    %v523 = vsub.f32 %v98, %v371
    %v524 = vsub.f32 %v99, %v372
    %v525 = vsub.f32 %v100, %v373
    %v526 = vsub.f32 %v101, %v374
    %v527 = vsub.f32 %v102, %v375
    %v528 = vsub.f32 %v103, %v376
    %v529 = vmul.f32 %v513, %v457
    %v530 = vmul.f32 %v514, %v458
    %v531 = vmul.f32 %v515, %v459
    %v532 = vmul.f32 %v516, %v460
    %v533 = vmul.f32 %v517, %v461
    %v534 = vmul.f32 %v518, %v462
    %v535 = vmul.f32 %v519, %v463
    %v536 = vmul.f32 %v520, %v464
    %v537 = vmul.f32 %v521, %v465
    %v538 = vmul.f32 %v522, %v466
    %v539 = vmul.f32 %v523, %v467
    %v540 = vmul.f32 %v524, %v468
    %v541 = vmul.f32 %v525, %v469
    %v542 = vmul.f32 %v526, %v470
    %v543 = vmul.f32 %v527, %v471
    %v544 = vmul.f32 %v528, %v472
    %v545 = vld [vmem:[#allocation7] sm:$0xff]
    %v546 = vld [vmem:[#allocation7 + $0x8] sm:$0xff]
    %v547 = vld [vmem:[#allocation7 + $0x10] sm:$0xff]
    %v548 = vld [vmem:[#allocation7 + $0x18] sm:$0xff]
    %v549 = vld [vmem:[#allocation7 + $0x20] sm:$0xff]
    %v550 = vld [vmem:[#allocation7 + $0x28] sm:$0xff]
    %v551 = vld [vmem:[#allocation7 + $0x30] sm:$0xff]
    %v552 = vld [vmem:[#allocation7 + $0x38] sm:$0xff]
    %v554 = vsel %vm104, %v529, 0
    %v557 = vsel %vm104, %v530, 0
    %v560 = vsel %vm104, %v531, 0
    %v563 = vsel %vm104, %v532, 0
    %v566 = vsel %vm104, %v533, 0
    %v569 = vsel %vm104, %v534, 0
    %v572 = vsel %vm104, %v535, 0
    %v575 = vsel %vm104, %v536, 0
    %v578 = vsel %vm104, %v537, 0
    %v581 = vsel %vm104, %v538, 0
    %v584 = vsel %vm104, %v539, 0
    %v587 = vsel %vm104, %v540, 0
    %v590 = vsel %vm104, %v541, 0
    %v593 = vsel %vm104, %v542, 0
    %v596 = vsel %vm104, %v543, 0
    %v599 = vsel %vm104, %v544, 0
    %601 = vmatprep.subr.mxu0 0.0
    %602 = vmatpush1.msra.mxu0 %v545
    %603 = vmatprep.subr.mxu0 0.0
    %604 = vmatpush1.msra.mxu0 %v546
    %605 = vmatprep.subr.mxu0 0.0
    %606 = vmatpush1.msra.mxu0 %v547
    %607 = vmatprep.subr.mxu0 0.0
    %608 = vmatpush1.msra.mxu0 %v548
    %609 = vmatprep.subr.mxu0 0.0
    %610 = vmatpush1.msra.mxu0 %v549
    %611 = vmatprep.subr.mxu0 0.0
    %612 = vmatpush1.msra.mxu0 %v550
    %613 = vmatprep.subr.mxu0 0.0
    %614 = vmatpush1.msra.mxu0 %v551
    %615 = vmatprep.subr.mxu0 0.0
    %616 = vmatpush1.msra.mxu0 %v552
    %617 = vmatprep.subr.mxu0 0.0
    %618 = vmatpush1.msra.mxu0 0.0
    %619 = vmatprep.subr.mxu0 0.0
    %620 = vmatpush1.msra.mxu0 0.0
    %621 = vmatprep.subr.mxu0 0.0
    %622 = vmatpush1.msra.mxu0 0.0
    %623 = vmatprep.subr.mxu0 0.0
    %624 = vmatpush1.msra.mxu0 0.0
    %625 = vmatprep.subr.mxu0 0.0
    %626 = vmatpush1.msra.mxu0 0.0
    %627 = vmatprep.subr.mxu0 0.0
    %628 = vmatpush1.msra.mxu0 0.0
    %629 = vmatprep.subr.mxu0 0.0
    %630 = vmatpush1.msra.mxu0 0.0
    %631 = vmatprep.subr.mxu0 0.0
    %632 = vmatpush1.msra.mxu0 0.0
    %633 = vmatprep.subr.mxu0 0.0
    %634 = vmatpush1.msra.mxu0 0.0
    %635 = vmatprep.subr.mxu0 0.0
    %636 = vmatpush1.msra.mxu0 0.0
    %637 = vmatprep.subr.mxu0 0.0
    %638 = vmatpush1.msra.mxu0 0.0
    %639 = vmatprep.subr.mxu0 0.0
    %640 = vmatpush1.msra.mxu0 0.0
    %641 = vmatprep.subr.mxu0 0.0
    %642 = vmatpush1.msra.mxu0 0.0
    %643 = vmatprep.subr.mxu0 0.0
    %644 = vmatpush1.msra.mxu0 0.0
    %645 = vmatprep.subr.mxu0 0.0
    %646 = vmatpush1.msra.mxu0 0.0
    %647 = vmatprep.subr.mxu0 0.0
    %648 = vmatpush1.msra.mxu0 0.0
    %649 = vmatprep.subr.mxu0 0.0
    %650 = vmatpush1.msra.mxu0 0.0
    %651 = vmatprep.subr.mxu0 0.0
    %652 = vmatpush1.msra.mxu0 0.0
    %653 = vmatprep.subr.mxu0 0.0
    %654 = vmatpush1.msra.mxu0 0.0
    %655 = vmatprep.subr.mxu0 0.0
    %656 = vmatpush1.msra.mxu0 0.0
    %657 = vmatprep.subr.mxu0 0.0
    %658 = vmatpush1.msra.mxu0 0.0
    %659 = vmatprep.subr.mxu0 0.0
    %660 = vmatpush1.msra.mxu0 0.0
    %661 = vmatprep.subr.mxu0 0.0
    %662 = vmatpush1.msra.mxu0 0.0
    %663 = vmatprep.subr.mxu0 0.0
    %664 = vmatpush1.msra.mxu0 0.0
    %665 = vmatprep.mubr.f32.mxu0 0.0
    %666 = vmatmul.mubr.f32.gmra.mrb[0].mxu0 %v554
    %v667 = vpop.f32.mrb[0].mxu0
    %v668 = vadd.f32 0.0, %v667
    %v669 = vpop.f32.mrb[0].mxu0
    %670 = vmatprep.mubr.f32.mxu0 0.0
    %671 = vmatmul.mubr.f32.gmra.mrb[0].mxu0 %v557
    %v672 = vpop.f32.mrb[0].mxu0
    %v673 = vadd.f32 0.0, %v672
    %v674 = vpop.f32.mrb[0].mxu0
    %675 = vmatprep.mubr.f32.mxu0 0.0
    %676 = vmatmul.mubr.f32.gmra.mrb[0].mxu0 %v560
    %v677 = vpop.f32.mrb[0].mxu0
    %v678 = vadd.f32 0.0, %v677
    %v679 = vpop.f32.mrb[0].mxu0
    %680 = vmatprep.mubr.f32.mxu0 0.0
    %681 = vmatmul.mubr.f32.gmra.mrb[0].mxu0 %v563
    %v682 = vpop.f32.mrb[0].mxu0
    %v683 = vadd.f32 0.0, %v682
    %v684 = vpop.f32.mrb[0].mxu0
    %685 = vmatprep.mubr.f32.mxu0 0.0
    %686 = vmatmul.mubr.f32.gmra.mrb[0].mxu0 %v566
    %v687 = vpop.f32.mrb[0].mxu0
    %v688 = vadd.f32 0.0, %v687
    %v689 = vpop.f32.mrb[0].mxu0
    %690 = vmatprep.mubr.f32.mxu0 0.0
    %691 = vmatmul.mubr.f32.gmra.mrb[0].mxu0 %v569
    %v692 = vpop.f32.mrb[0].mxu0
    %v693 = vadd.f32 0.0, %v692
    %v694 = vpop.f32.mrb[0].mxu0
    %695 = vmatprep.mubr.f32.mxu0 0.0
    %696 = vmatmul.mubr.f32.gmra.mrb[0].mxu0 %v572
    %v697 = vpop.f32.mrb[0].mxu0
    %v698 = vadd.f32 0.0, %v697
    %v699 = vpop.f32.mrb[0].mxu0
    %700 = vmatprep.mubr.f32.mxu0 0.0
    %701 = vmatmul.mubr.f32.gmra.mrb[0].mxu0 %v575
    %v702 = vpop.f32.mrb[0].mxu0
    %v703 = vadd.f32 0.0, %v702
    %v704 = vpop.f32.mrb[0].mxu0
    %705 = vmatprep.mubr.f32.mxu0 0.0
    %706 = vmatmul.mubr.f32.gmra.mrb[0].mxu0 %v578
    %v707 = vpop.f32.mrb[0].mxu0
    %v708 = vadd.f32 0.0, %v707
    %v709 = vpop.f32.mrb[0].mxu0
    %710 = vmatprep.mubr.f32.mxu0 0.0
    %711 = vmatmul.mubr.f32.gmra.mrb[0].mxu0 %v581
    %v712 = vpop.f32.mrb[0].mxu0
    %v713 = vadd.f32 0.0, %v712
    %v714 = vpop.f32.mrb[0].mxu0
    %715 = vmatprep.mubr.f32.mxu0 0.0
    %716 = vmatmul.mubr.f32.gmra.mrb[0].mxu0 %v584
    %v717 = vpop.f32.mrb[0].mxu0
    %v718 = vadd.f32 0.0, %v717
    %v719 = vpop.f32.mrb[0].mxu0
    %720 = vmatprep.mubr.f32.mxu0 0.0
    %721 = vmatmul.mubr.f32.gmra.mrb[0].mxu0 %v587
    %v722 = vpop.f32.mrb[0].mxu0
    %v723 = vadd.f32 0.0, %v722
    %v724 = vpop.f32.mrb[0].mxu0
    %725 = vmatprep.mubr.f32.mxu0 0.0
    %726 = vmatmul.mubr.f32.gmra.mrb[0].mxu0 %v590
    %v727 = vpop.f32.mrb[0].mxu0
    %v728 = vadd.f32 0.0, %v727
    %v729 = vpop.f32.mrb[0].mxu0
    %730 = vmatprep.mubr.f32.mxu0 0.0
    %731 = vmatmul.mubr.f32.gmra.mrb[0].mxu0 %v593
    %v732 = vpop.f32.mrb[0].mxu0
    %v733 = vadd.f32 0.0, %v732
    %v734 = vpop.f32.mrb[0].mxu0
    %735 = vmatprep.mubr.f32.mxu0 0.0
    %736 = vmatmul.mubr.f32.gmra.mrb[0].mxu0 %v596
    %v737 = vpop.f32.mrb[0].mxu0
    %v738 = vadd.f32 0.0, %v737
    %v739 = vpop.f32.mrb[0].mxu0
    %740 = vmatprep.mubr.f32.mxu0 0.0
    %741 = vmatmul.mubr.f32.gmra.mrb[0].mxu0 %v599
    %v742 = vpop.f32.mrb[0].mxu0
    %v743 = vadd.f32 0.0, %v742
    %v744 = vpop.f32.mrb[0].mxu0
    %745 = vdwg.mxu0
    %v747 = vsel %vm104, %v489, 0
    %v750 = vsel %vm104, %v490, 0
    %v753 = vsel %vm104, %v491, 0
    %v756 = vsel %vm104, %v492, 0
    %v759 = vsel %vm104, %v493, 0
    %v762 = vsel %vm104, %v494, 0
    %v765 = vsel %vm104, %v495, 0
    %v768 = vsel %vm104, %v496, 0
    %v771 = vsel %vm104, %v497, 0
    %v774 = vsel %vm104, %v498, 0
    %v777 = vsel %vm104, %v499, 0
    %v780 = vsel %vm104, %v500, 0
    %v783 = vsel %vm104, %v501, 0
    %v786 = vsel %vm104, %v502, 0
    %v789 = vsel %vm104, %v503, 0
    %v792 = vsel %vm104, %v504, 0
    %794 = vmatprep.subr.mxu0 0.0
    %795 = vmatpush1.msra.mxu0 %v505
    %796 = vmatprep.subr.mxu0 0.0
    %797 = vmatpush1.msra.mxu0 %v506
    %798 = vmatprep.subr.mxu0 0.0
    %799 = vmatpush1.msra.mxu0 %v507
    %800 = vmatprep.subr.mxu0 0.0
    %801 = vmatpush1.msra.mxu0 %v508
    %802 = vmatprep.subr.mxu0 0.0
    %803 = vmatpush1.msra.mxu0 %v509
    %804 = vmatprep.subr.mxu0 0.0
    %805 = vmatpush1.msra.mxu0 %v510
    %806 = vmatprep.subr.mxu0 0.0
    %807 = vmatpush1.msra.mxu0 %v511
    %808 = vmatprep.subr.mxu0 0.0
    %809 = vmatpush1.msra.mxu0 %v512
    %810 = vmatprep.subr.mxu0 0.0
    %811 = vmatpush1.msra.mxu0 0.0
    %812 = vmatprep.subr.mxu0 0.0
    %813 = vmatpush1.msra.mxu0 0.0
    %814 = vmatprep.subr.mxu0 0.0
    %815 = vmatpush1.msra.mxu0 0.0
    %816 = vmatprep.subr.mxu0 0.0
    %817 = vmatpush1.msra.mxu0 0.0
    %818 = vmatprep.subr.mxu0 0.0
    %819 = vmatpush1.msra.mxu0 0.0
    %820 = vmatprep.subr.mxu0 0.0
    %821 = vmatpush1.msra.mxu0 0.0
    %822 = vmatprep.subr.mxu0 0.0
    %823 = vmatpush1.msra.mxu0 0.0
    %824 = vmatprep.subr.mxu0 0.0
    %825 = vmatpush1.msra.mxu0 0.0
    %826 = vmatprep.subr.mxu0 0.0
    %827 = vmatpush1.msra.mxu0 0.0
    %828 = vmatprep.subr.mxu0 0.0
    %829 = vmatpush1.msra.mxu0 0.0
    %830 = vmatprep.subr.mxu0 0.0
    %831 = vmatpush1.msra.mxu0 0.0
    %832 = vmatprep.subr.mxu0 0.0
    %833 = vmatpush1.msra.mxu0 0.0
    %834 = vmatprep.subr.mxu0 0.0
    %835 = vmatpush1.msra.mxu0 0.0
    %836 = vmatprep.subr.mxu0 0.0
    %837 = vmatpush1.msra.mxu0 0.0
    %838 = vmatprep.subr.mxu0 0.0
    %839 = vmatpush1.msra.mxu0 0.0
    %840 = vmatprep.subr.mxu0 0.0
    %841 = vmatpush1.msra.mxu0 0.0
    %842 = vmatprep.subr.mxu0 0.0
    %843 = vmatpush1.msra.mxu0 0.0
    %844 = vmatprep.subr.mxu0 0.0
    %845 = vmatpush1.msra.mxu0 0.0
    %846 = vmatprep.subr.mxu0 0.0
    %847 = vmatpush1.msra.mxu0 0.0
    %848 = vmatprep.subr.mxu0 0.0
    %849 = vmatpush1.msra.mxu0 0.0
    %850 = vmatprep.subr.mxu0 0.0
    %851 = vmatpush1.msra.mxu0 0.0
    %852 = vmatprep.subr.mxu0 0.0
    %853 = vmatpush1.msra.mxu0 0.0
    %854 = vmatprep.subr.mxu0 0.0
    %855 = vmatpush1.msra.mxu0 0.0
    %856 = vmatprep.subr.mxu0 0.0
    %857 = vmatpush1.msra.mxu0 0.0
    %858 = vmatprep.mubr.f32.mxu0 0.0
    %859 = vmatmul.mubr.f32.gmra.mrb[0].mxu0 %v747
    %v860 = vpop.f32.mrb[0].mxu0
    %v861 = vadd.f32 %v668, %v860
    %v862 = vpop.f32.mrb[0].mxu0
    %863 = vmatprep.mubr.f32.mxu0 0.0
    %864 = vmatmul.mubr.f32.gmra.mrb[0].mxu0 %v750
    %v865 = vpop.f32.mrb[0].mxu0
    %v866 = vadd.f32 %v673, %v865
    %v867 = vpop.f32.mrb[0].mxu0
    %868 = vmatprep.mubr.f32.mxu0 0.0
    %869 = vmatmul.mubr.f32.gmra.mrb[0].mxu0 %v753
    %v870 = vpop.f32.mrb[0].mxu0
    %v871 = vadd.f32 %v678, %v870
    %v872 = vpop.f32.mrb[0].mxu0
    %873 = vmatprep.mubr.f32.mxu0 0.0
    %874 = vmatmul.mubr.f32.gmra.mrb[0].mxu0 %v756
    %v875 = vpop.f32.mrb[0].mxu0
    %v876 = vadd.f32 %v683, %v875
    %v877 = vpop.f32.mrb[0].mxu0
    %878 = vmatprep.mubr.f32.mxu0 0.0
    %879 = vmatmul.mubr.f32.gmra.mrb[0].mxu0 %v759
    %v880 = vpop.f32.mrb[0].mxu0
    %v881 = vadd.f32 %v688, %v880
    %v882 = vpop.f32.mrb[0].mxu0
    %883 = vmatprep.mubr.f32.mxu0 0.0
    %884 = vmatmul.mubr.f32.gmra.mrb[0].mxu0 %v762
    %v885 = vpop.f32.mrb[0].mxu0
    %v886 = vadd.f32 %v693, %v885
    %v887 = vpop.f32.mrb[0].mxu0
    %888 = vmatprep.mubr.f32.mxu0 0.0
    %889 = vmatmul.mubr.f32.gmra.mrb[0].mxu0 %v765
    %v890 = vpop.f32.mrb[0].mxu0
    %v891 = vadd.f32 %v698, %v890
    %v892 = vpop.f32.mrb[0].mxu0
    %893 = vmatprep.mubr.f32.mxu0 0.0
    %894 = vmatmul.mubr.f32.gmra.mrb[0].mxu0 %v768
    %v895 = vpop.f32.mrb[0].mxu0
    %v896 = vadd.f32 %v703, %v895
    %v897 = vpop.f32.mrb[0].mxu0
    %898 = vmatprep.mubr.f32.mxu0 0.0
    %899 = vmatmul.mubr.f32.gmra.mrb[0].mxu0 %v771
    %v900 = vpop.f32.mrb[0].mxu0
    %v901 = vadd.f32 %v708, %v900
    %v902 = vpop.f32.mrb[0].mxu0
    %903 = vmatprep.mubr.f32.mxu0 0.0
    %904 = vmatmul.mubr.f32.gmra.mrb[0].mxu0 %v774
    %v905 = vpop.f32.mrb[0].mxu0
    %v906 = vadd.f32 %v713, %v905
    %v907 = vpop.f32.mrb[0].mxu0
    %908 = vmatprep.mubr.f32.mxu0 0.0
    %909 = vmatmul.mubr.f32.gmra.mrb[0].mxu0 %v777
    %v910 = vpop.f32.mrb[0].mxu0
    %v911 = vadd.f32 %v718, %v910
    %v912 = vpop.f32.mrb[0].mxu0
    %913 = vmatprep.mubr.f32.mxu0 0.0
    %914 = vmatmul.mubr.f32.gmra.mrb[0].mxu0 %v780
    %v915 = vpop.f32.mrb[0].mxu0
    %v916 = vadd.f32 %v723, %v915
    %v917 = vpop.f32.mrb[0].mxu0
    %918 = vmatprep.mubr.f32.mxu0 0.0
    %919 = vmatmul.mubr.f32.gmra.mrb[0].mxu0 %v783
    %v920 = vpop.f32.mrb[0].mxu0
    %v921 = vadd.f32 %v728, %v920
    %v922 = vpop.f32.mrb[0].mxu0
    %923 = vmatprep.mubr.f32.mxu0 0.0
    %924 = vmatmul.mubr.f32.gmra.mrb[0].mxu0 %v786
    %v925 = vpop.f32.mrb[0].mxu0
    %v926 = vadd.f32 %v733, %v925
    %v927 = vpop.f32.mrb[0].mxu0
    %928 = vmatprep.mubr.f32.mxu0 0.0
    %929 = vmatmul.mubr.f32.gmra.mrb[0].mxu0 %v789
    %v930 = vpop.f32.mrb[0].mxu0
    %v931 = vadd.f32 %v738, %v930
    %v932 = vpop.f32.mrb[0].mxu0
    %933 = vmatprep.mubr.f32.mxu0 0.0
    %934 = vmatmul.mubr.f32.gmra.mrb[0].mxu0 %v792
    %v935 = vpop.f32.mrb[0].mxu0
    %v936 = vadd.f32 %v743, %v935
    %v937 = vpop.f32.mrb[0].mxu0
    %938 = vdwg.mxu0
    %v939 = vld [vmem:[#allocation8] sm:$0x1]
    %v941 = vlaneseq
    %v942 = vshrl.u32 %v941, 7
    %v943 = vsub.s32 0, %v942
    %v944 = vrot.slane %v939, %v943
    %v946 = vadd.f32 %v861, %v944
    %v947 = vadd.f32 %v866, %v944
    %v948 = vadd.f32 %v871, %v944
    %v949 = vadd.f32 %v876, %v944
    %v950 = vadd.f32 %v881, %v944
    %v951 = vadd.f32 %v886, %v944
    %v952 = vadd.f32 %v891, %v944
    %v953 = vadd.f32 %v896, %v944
    %v954 = vadd.f32 %v901, %v944
    %v955 = vadd.f32 %v906, %v944
    %v956 = vadd.f32 %v911, %v944
    %v957 = vadd.f32 %v916, %v944
    %v958 = vadd.f32 %v921, %v944
    %v959 = vadd.f32 %v926, %v944
    %v960 = vadd.f32 %v931, %v944
    %v961 = vadd.f32 %v936, %v944
    %962 = vst.msk [vmem:[#allocation10] sm:$0xff] %vm104, %v946
    %963 = vst.msk [vmem:[#allocation10 + $0x8] sm:$0xff] %vm104, %v947
    %964 = vst.msk [vmem:[#allocation10 + $0x10] sm:$0xff] %vm104, %v948
    %965 = vst.msk [vmem:[#allocation10 + $0x18] sm:$0xff] %vm104, %v949
    %966 = vst.msk [vmem:[#allocation10 + $0x20] sm:$0xff] %vm104, %v950
    %967 = vst.msk [vmem:[#allocation10 + $0x28] sm:$0xff] %vm104, %v951
    %968 = vst.msk [vmem:[#allocation10 + $0x30] sm:$0xff] %vm104, %v952
    %969 = vst.msk [vmem:[#allocation10 + $0x38] sm:$0xff] %vm104, %v953
    %970 = vst.msk [vmem:[#allocation10 + $0x40] sm:$0xff] %vm104, %v954
    %971 = vst.msk [vmem:[#allocation10 + $0x48] sm:$0xff] %vm104, %v955
    %972 = vst.msk [vmem:[#allocation10 + $0x50] sm:$0xff] %vm104, %v956
    %973 = vst.msk [vmem:[#allocation10 + $0x58] sm:$0xff] %vm104, %v957
    %974 = vst.msk [vmem:[#allocation10 + $0x60] sm:$0xff] %vm104, %v958
    %975 = vst.msk [vmem:[#allocation10 + $0x68] sm:$0xff] %vm104, %v959
    %976 = vst.msk [vmem:[#allocation10 + $0x70] sm:$0xff] %vm104, %v960
    %977 = vst.msk [vmem:[#allocation10 + $0x78] sm:$0xff] %vm104, %v961
    // Predicated region
    $region34: #{tpu_custom_call.1} parent=1 // pred_check
      _
    $region35: #{tpu_custom_call.1} parent=1 // pred_check_branch
      %979 = sbr.rel (0) target = $region37
    $region36: #{tpu_custom_call.1} parent=1 // pred_region
      %s981 = ssub.s32 2048, 2048
      %982 = vsyncadd [#allocation4], %s981
      %s983 = sshll.u32 [#allocation10], 4
      %s984 = int_to_ptr.vmem [resolvable:$true] %s983
      %989 = dma.vmem_to_hbm [thread:$0]  %s984, 2048, %s4, [#allocation4], 128, 128, 8
    $region37: #{tpu_custom_call.1} parent=1 // pred_fallthru
      _
    // Predicated region
    $region38: #{tpu_custom_call.1} parent=1 // pred_check
      _
    $region39: #{tpu_custom_call.1} parent=1 // pred_check_branch
      %991 = sbr.rel (0) target = $region41
    $region40: #{tpu_custom_call.1} parent=1 // pred_region
      %992 = dma.done [#allocation4], 2048
    $region41: #{tpu_custom_call.1} parent=1 // pred_fallthru
      _
    %993 = vsyncpa [#allocation3], 1
    %994 = vsyncpa [#allocation6], 1
    %995 = vsyncpa [#allocation9], 1
    %996 = vsyncpa [#allocation4], 1

</llo_original>
